<compile_context>
chip_gen: v7x
topology: tpu7x:2x2x1
jax: 0.10.0
libtpu: 0.0.40
codegen_flags: <defaults>
</compile_context>

<pallas_src>
import jax
import jax.numpy as jnp
from jax.experimental import pallas as pl
from jax.experimental.pallas import tpu as pltpu


# --------------------------- VMEM / tiling helpers ---------------------------

def _vmem_budget():
    """Per-generation scoped-VMEM limit and per-kernel tiling budget (bytes)."""
    try:
        info = pltpu.get_tpu_info()
        cap = int(getattr(info, "vmem_capacity_bytes", 64 * 1024 * 1024))
    except Exception:
        cap = 64 * 1024 * 1024                     # conservative: v7x per-TC VMEM
    limit = min((cap * 3) // 4, 64 * 1024 * 1024)  # headroom for Mosaic internals
    return limit, limit // 2


_VMEM_LIMIT, _TILE_BUDGET = _vmem_budget()


def _round_up(x, m):
    return (x + m - 1) // m * m


def _pick_tile_m(M, K, Cout, n_patch_sets=1, out_bytes=2, max_tm=8192):
    """Lane-dim tile: multiple of 128; double-buffered tiles within the budget.

    Returns (tm, m_pad) with m_pad a multiple of tm so every tile is full
    (unmasked lane-dense stores)."""
    per_m = 2 * (n_patch_sets * K * 2) + 2 * (Cout * out_bytes)  # 2x buffers
    cap = max(128, min(max_tm, (_TILE_BUDGET // per_m) // 128 * 128))
    tm = min(cap, _round_up(M, 128))
    m_pad = _round_up(M, tm)
    return tm, m_pad


def _pad_last(a, target):
    pad = target - a.shape[-1]
    if pad == 0:
        return a
    return jnp.pad(a, [(0, 0)] * (a.ndim - 1) + [(0, pad)])


# ------------------------------ Pallas kernels -------------------------------

def _conv_pair_kernel(w_ref, b_ref, p_ref, o_ref):
    # w (1,Cout,K) bf16 | b (1,Cout,1) f32 | p (1,K,tm) bf16 | o (1,Cout,tm)
    acc = jnp.dot(w_ref[0], p_ref[0], preferred_element_type=jnp.float32)
    o_ref[0] = (acc + b_ref[0]).astype(o_ref.dtype)


def _conv_pair_pool_kernel(w_ref, b_ref, p_ref, o_ref):
    # Fused max_pool3d((2,1,1)): the pool pair rides inside the patch block,
    # two MXU dots + one VPU max per grid step (no accumulator revisit).
    # w (1,Cout,K) bf16 | b (1,Cout,1) f32 | p (1,2,K,tm) bf16 | o (1,Cout,tm)
    w = w_ref[0]
    a0 = jnp.dot(w, p_ref[0, 0], preferred_element_type=jnp.float32)
    a1 = jnp.dot(w, p_ref[0, 1], preferred_element_type=jnp.float32)
    o_ref[0] = (jnp.maximum(a0, a1) + b_ref[0]).astype(o_ref.dtype)


def pallas_conv_pair(weights, bias, patches, out_dtype=jnp.bfloat16):
    """weights (2,Cout,K) bf16, bias (2,Cout,1) f32, patches (2,K,M) bf16
       -> (2,Cout,M) out_dtype. Lane-dense: M on the 128-lane axis."""
    _, Cout, K = weights.shape
    M = patches.shape[-1]
    ob = jnp.dtype(out_dtype).itemsize
    tm, m_pad = _pick_tile_m(M, K, Cout, n_patch_sets=1, out_bytes=ob)
    patches = _pad_last(patches, m_pad)
    grid = (2, m_pad // tm)  # conv axis keeps >=2 parallel steps for v7x's 2 TCs
    out = pl.pallas_call(
        _conv_pair_kernel,
        out_shape=jax.ShapeDtypeStruct((2, Cout, m_pad), out_dtype),
        grid=grid,
        in_specs=[
            pl.BlockSpec((1, Cout, K), lambda c, m: (c, 0, 0)),   # weights resident
            pl.BlockSpec((1, Cout, 1), lambda c, m: (c, 0, 0)),   # bias resident
            pl.BlockSpec((1, K, tm), lambda c, m: (c, 0, m)),     # patch tile
        ],
        out_specs=pl.BlockSpec((1, Cout, tm), lambda c, m: (c, 0, m)),
        compiler_params=pltpu.CompilerParams(
            dimension_semantics=("parallel", "parallel"),
            vmem_limit_bytes=_VMEM_LIMIT),
        cost_estimate=pl.CostEstimate(
            flops=2 * 2 * Cout * K * m_pad, transcendentals=0,
            bytes_accessed=(weights.size * 2 + bias.size * 4
                            + 2 * K * m_pad * 2 + 2 * Cout * m_pad * ob)),
    )(weights, bias, patches)
    return out[..., :M] if m_pad != M else out


def pallas_conv_pair_pool(weights, bias, patches, out_dtype=jnp.float32):
    """weights (2,Cout,K) bf16, bias (2,Cout,1) f32,
       patches (2 convs, 2 pool-pair, K, Mp) bf16
       -> (2, Cout, Mp) out_dtype = max over the pool pair, + bias."""
    _, Cout, K = weights.shape
    Mp = patches.shape[-1]
    ob = jnp.dtype(out_dtype).itemsize
    tm, m_pad = _pick_tile_m(Mp, K, Cout, n_patch_sets=2, out_bytes=ob)
    patches = _pad_last(patches, m_pad)
    grid = (2, m_pad // tm)
    out = pl.pallas_call(
        _conv_pair_pool_kernel,
        out_shape=jax.ShapeDtypeStruct((2, Cout, m_pad), out_dtype),
        grid=grid,
        in_specs=[
            pl.BlockSpec((1, Cout, K), lambda c, m: (c, 0, 0)),
            pl.BlockSpec((1, Cout, 1), lambda c, m: (c, 0, 0)),
            pl.BlockSpec((1, 2, K, tm), lambda c, m: (c, 0, 0, m)),
        ],
        out_specs=pl.BlockSpec((1, Cout, tm), lambda c, m: (c, 0, m)),
        compiler_params=pltpu.CompilerParams(
            dimension_semantics=("parallel", "parallel"),
            vmem_limit_bytes=_VMEM_LIMIT),
        cost_estimate=pl.CostEstimate(
            flops=2 * 2 * 2 * Cout * K * m_pad, transcendentals=0,
            bytes_accessed=(weights.size * 2 + bias.size * 4
                            + 2 * 2 * K * m_pad * 2 + 2 * Cout * m_pad * ob)),
    )(weights, bias, patches)
    return out[..., :Mp] if m_pad != Mp else out


# -------------------------------- Conv3d glue --------------------------------

def _im2col_cf(x_cf, ksize, stride, pad, pairify=False):
    """Channel-first im2col.  x_cf: (C, N, D, H, W) (bf16).

    K ordering is (C, kd, kh, kw) to match PyTorch's w.reshape(Cout, -1).
      pairify=False: (K, N*Do*Ho*Wo)
      pairify=True : (2, K, N*(Do//2)*Ho*Wo)  pool-pair-major, so the fused
                     max_pool3d((2,1,1)) pair sits inside the kernel's patch
                     block (no separate pairify pass over the patch matrix).
    Returns (patches, (Do, Ho, Wo))."""
    kd, kh, kw = ksize
    sd, sh, sw = stride
    pd, ph, pw = pad
    xp = jnp.pad(x_cf, ((0, 0), (0, 0), (pd, pd), (ph, ph), (pw, pw)))
    C, N, Dp, Hp, Wp = xp.shape
    Do = (Dp - kd) // sd + 1
    Ho = (Hp - kh) // sh + 1
    Wo = (Wp - kw) // sw + 1
    if pairify:
        # TODO(synk): odd conv-output depth needs an unfused-pool fallback.
        assert Do % 2 == 0, "fused max-pool pairing needs an even conv-output depth"
    cols = []
    for i in range(kd):
        for j in range(kh):
            for k in range(kw):
                sl = xp[:, :,
                        i:i + (Do - 1) * sd + 1:sd,
                        j:j + (Ho - 1) * sh + 1:sh,
                        k:k + (Wo - 1) * sw + 1:sw]            # (C, N, Do, Ho, Wo)
                if pairify:
                    sl = sl.reshape(C, N, Do // 2, 2, Ho, Wo)
                    sl = sl.transpose(3, 0, 1, 2, 4, 5)        # (2, C, N, Do/2, Ho, Wo)
                cols.append(sl)
    K = C * kd * kh * kw
    if pairify:
        pat = jnp.stack(cols, axis=2)                          # (2, C, Kvol, N, Do/2, Ho, Wo)
        pat = pat.reshape(2, K, N * (Do // 2) * Ho * Wo)
    else:
        pat = jnp.stack(cols, axis=1)                          # (C, Kvol, N, Do, Ho, Wo)
        pat = pat.reshape(K, N * Do * Ho * Wo)
    return pat, (Do, Ho, Wo)


# ---------------------------------- VH_block ----------------------------------

class VHBlockPallas:
    def __init__(self, in_c=8, out_c=8, t=2, h_size=3, v_size=3, times=1,
                 key=jax.random.PRNGKey(0)):
        assert in_c == out_c, "forward re-feeds conv outputs; needs in_c == out_c"
        assert h_size == v_size, "fused conv pair requires equal K (h_size == v_size)"
        k1, k2, k3, k4 = jax.random.split(key, 4)

        def uinit(k, shape, fan_in):
            bound = 1.0 / (fan_in ** 0.5)
            return jax.random.uniform(k, shape, jnp.float32, -bound, bound)

        # Conv_h: kernel (t, 1*times, h_size), stride (2,1,2), pad (0,0,1)
        self.ksize_h = (t, 1 * times, h_size)
        fan_h = in_c * t * (1 * times) * h_size
        self.wh = uinit(k1, (out_c, in_c) + self.ksize_h, fan_h)
        self.bh = uinit(k2, (out_c,), fan_h)
        self.stride_h, self.pad_h = (2, 1, 2), (0, 0, 1)

        # Conv_v: kernel (t, v_size, 1*times), stride (2,2,1), pad (0,1,0)
        self.ksize_v = (t, v_size, 1 * times)
        fan_v = in_c * t * v_size * (1 * times)
        self.wv = uinit(k3, (out_c, in_c) + self.ksize_v, fan_v)
        self.bv = uinit(k4, (out_c,), fan_v)
        self.stride_v, self.pad_v = (2, 2, 1), (0, 1, 0)

        self.out_c = out_c

    def __call__(self, x):
        N, Cin, D, H, W = x.shape
        assert H == W, "module's cat([h, v.permute]) requires square spatial input"
        Cout = self.out_c

        # Single channel-first + bf16 pass over the input; everything between
        # the two pallas_calls stays channel-first bf16 (no transposes).
        x_cf = jnp.transpose(x, (1, 0, 2, 3, 4)).astype(jnp.bfloat16)

        # -------- stage 1: conv_h(x) + conv_v(x) in one pallas_call ----------
        ph, (D1, H1h, W1h) = _im2col_cf(x_cf, self.ksize_h, self.stride_h, self.pad_h)
        pv, (_, H1v, W1v) = _im2col_cf(x_cf, self.ksize_v, self.stride_v, self.pad_v)
        K = ph.shape[0]
        M1 = N * D1 * H1h * W1h
        assert pv.shape == (K, M1)

        patches1 = jnp.stack([ph, pv], axis=0)                 # (2, K, M1) bf16
        w1 = jnp.stack([self.wh.reshape(Cout, K),
                        self.wv.reshape(Cout, K)], axis=0).astype(jnp.bfloat16)
        b1 = jnp.stack([self.bh, self.bv], axis=0).reshape(2, Cout, 1)

        out1 = pallas_conv_pair(w1, b1, patches1, out_dtype=jnp.bfloat16)
        h = out1[0].reshape(Cout, N, D1, H1h, W1h)             # channel-first bf16
        v = out1[1].reshape(Cout, N, D1, H1v, W1v)

        # -------- stage 2 inputs (concat along D, still channel-first) -------
        _v = jnp.swapaxes(v, 3, 4)
        _h = jnp.swapaxes(h, 3, 4)
        cat1 = jnp.concatenate([h, _v], axis=2)                # input of Conv_v -> f_h
        cat2 = jnp.concatenate([v, _h], axis=2)                # input of Conv_h -> f_v

        # -------- stage 2: conv pair with max_pool3d((2,1,1)) fused in-body ---
        pfh, (D2, H2, W2) = _im2col_cf(cat1, self.ksize_v, self.stride_v,
                                       self.pad_v, pairify=True)
        pfv, (D2b, H2b, W2b) = _im2col_cf(cat2, self.ksize_h, self.stride_h,
                                          self.pad_h, pairify=True)
        K2 = pfh.shape[1]
        assert pfv.shape[1] == K2 and D2b == D2 and H2 * W2 == H2b * W2b
        Mp = N * (D2 // 2) * H2 * W2

        patches2 = jnp.stack([pfh, pfv], axis=0)               # (2, 2, K2, Mp) bf16
        # f_h uses Conv_v's weights, f_v uses Conv_h's weights
        w2 = jnp.stack([self.wv.reshape(Cout, K2),
                        self.wh.reshape(Cout, K2)], axis=0).astype(jnp.bfloat16)
        b2 = jnp.stack([self.bv, self.bh], axis=0).reshape(2, Cout, 1)

        out2 = pallas_conv_pair_pool(w2, b2, patches2)         # (2, Cout, Mp) f32

        pooled_fh = out2[0].reshape(Cout, N, D2 // 2, H2, W2)
        pooled_fv = out2[1].reshape(Cout, N, D2 // 2, H2b, W2b)
        # res = cat([f_h, f_v], D); max_pool3d((2,1,1)) == cat of per-branch pools
        res = jnp.concatenate([pooled_fh, pooled_fv], axis=2)
        return jnp.transpose(res, (1, 0, 2, 3, 4))             # back to NCDHW


# ---------------------- pure-JAX reference (for checking) ---------------------

def _conv3d_ref(x, w, b, stride, pad):
    dn = jax.lax.conv_dimension_numbers(x.shape, w.shape,
                                        ("NCDHW", "OIDHW", "NCDHW"))
    y = jax.lax.conv_general_dilated(
        x, w, window_strides=stride,
        padding=[(pad[0], pad[0]), (pad[1], pad[1]), (pad[2], pad[2])],
        dimension_numbers=dn, preferred_element_type=jnp.float32)
    return y + b.reshape(1, -1, 1, 1, 1)


def _vh_block_ref(blk, x):
    h = _conv3d_ref(x, blk.wh, blk.bh, blk.stride_h, blk.pad_h)
    v = _conv3d_ref(x, blk.wv, blk.bv, blk.stride_v, blk.pad_v)
    _v = jnp.transpose(v, (0, 1, 2, 4, 3))
    _h = jnp.transpose(h, (0, 1, 2, 4, 3))
    f_h = _conv3d_ref(jnp.concatenate([h, _v], axis=2),
                      blk.wv, blk.bv, blk.stride_v, blk.pad_v)
    f_v = _conv3d_ref(jnp.concatenate([v, _h], axis=2),
                      blk.wh, blk.bh, blk.stride_h, blk.pad_h)
    res = jnp.concatenate([f_h, f_v], axis=2)
    return jnp.maximum(res[:, :, 0::2], res[:, :, 1::2])


# ------------------------------------ main ------------------------------------

if __name__ == "__main__":
    key = jax.random.PRNGKey(0)
    kx, kp = jax.random.split(key)

    # small shapes consistent with the module: N=2, C=8, D=4, H=W=8
    N, C, D, H, W = 2, 8, 4, 8, 8
    x = jax.random.normal(kx, (N, C, D, H, W), jnp.float32)

    block = VHBlockPallas(in_c=C, out_c=C, t=2, h_size=3, v_size=3, times=1, key=kp)

    out = jax.jit(block.__call__)(x)
    out = jax.block_until_ready(out)
    assert out.shape == (2, 8, 2, 4, 4), out.shape

    ref = _vh_block_ref(block, x)
    max_err = float(jnp.max(jnp.abs(out - ref)))
    # bf16 MXU operands / bf16 inter-stage tensors with f32 accumulation
    assert jnp.allclose(out, ref, atol=3e-2, rtol=3e-2), max_err

    print("KERNEL_OK")
</pallas_src>

<mosaic_0001>
module attributes {stable_mosaic.version = 11 : i64} {
  func.func @_conv_pair_kernel(%arg0: i32, %arg1: i32, %arg2: memref<1x8x48xbf16, #tpu.memory_space<vmem>>, %arg3: memref<1x8x1xf32, #tpu.memory_space<vmem>>, %arg4: memref<1x48x128xbf16, #tpu.memory_space<vmem>>, %arg5: memref<1x8x128xbf16, #tpu.memory_space<vmem>>) attributes {dimension_semantics = [#tpu.dimension_semantics<parallel>, #tpu.dimension_semantics<parallel>], iteration_bounds = array<i64: 2, 1>, scalar_prefetch = 0 : i64, scratch_operands = 0 : i64, tpu.core_type = #tpu.core_type<tc>, window_params = [{transform_indices = @transform_0, window_bounds = array<i64: 1, 8, 48>}, {transform_indices = @transform_1, window_bounds = array<i64: 1, 8, 1>}, {transform_indices = @transform_2, window_bounds = array<i64: 1, 48, 128>}, {transform_indices = @transform_3, window_bounds = array<i64: 1, 8, 128>}]} {
    %c0 = arith.constant 0 : index
    %c0_0 = arith.constant 0 : index
    %c0_1 = arith.constant 0 : index
    %0 = vector.load %arg2[%c0, %c0_0, %c0_1] : memref<1x8x48xbf16, #tpu.memory_space<vmem>>, vector<1x8x48xbf16>
    %1 = vector.shape_cast %0 : vector<1x8x48xbf16> to vector<8x48xbf16>
    %c0_2 = arith.constant 0 : index
    %c0_3 = arith.constant 0 : index
    %c0_4 = arith.constant 0 : index
    %2 = vector.load %arg4[%c0_2, %c0_3, %c0_4] : memref<1x48x128xbf16, #tpu.memory_space<vmem>>, vector<1x48x128xbf16>
    %3 = vector.shape_cast %2 : vector<1x48x128xbf16> to vector<48x128xbf16>
    %cst = arith.constant dense<0.000000e+00> : vector<8x128xf32>
    %4 = tpu.matmul %1, %3, %cst {dimension_numbers = #tpu.dot_dimension_numbers<[1], [0], [0], [1], [0, 0, 1, 1], [], []>} : vector<8x48xbf16>, vector<48x128xbf16>, vector<8x128xf32> -> vector<8x128xf32>
    %c0_5 = arith.constant 0 : index
    %c0_6 = arith.constant 0 : index
    %c0_7 = arith.constant 0 : index
    %5 = vector.load %arg3[%c0_5, %c0_6, %c0_7] : memref<1x8x1xf32, #tpu.memory_space<vmem>>, vector<1x8x1xf32>
    %6 = vector.shape_cast %5 : vector<1x8x1xf32> to vector<8x1xf32>
    %7 = vector.broadcast %6 : vector<8x1xf32> to vector<8x128xf32>
    %8 = arith.addf %4, %7 : vector<8x128xf32>
    %9 = arith.truncf %8 : vector<8x128xf32> to vector<8x128xbf16>
    %c0_8 = arith.constant 0 : index
    %c0_9 = arith.constant 0 : index
    %c0_10 = arith.constant 0 : index
    %10 = vector.load %arg5[%c0_8, %c0_9, %c0_10] : memref<1x8x128xbf16, #tpu.memory_space<vmem>>, vector<1x8x128xbf16>
    %11 = vector.shape_cast %10 : vector<1x8x128xbf16> to vector<8x128xbf16>
    %12 = vector.shape_cast %9 : vector<8x128xbf16> to vector<1x8x128xbf16>
    tpu.vector_store %arg5[%c0_8, %c0_9, %c0_10], %12 {strides = array<i32>} : memref<1x8x128xbf16, #tpu.memory_space<vmem>>, vector<1x8x128xbf16>,
    return
  }
  func.func @transform_0(%arg0: i32, %arg1: i32) -> (i32, i32, i32) {
    %c0_i32 = arith.constant 0 : i32
    %c0_i32_0 = arith.constant 0 : i32
    %c0_i32_1 = arith.constant 0 : i32
    return %arg0, %c0_i32, %c0_i32_0 : i32, i32, i32
  }
  func.func @transform_1(%arg0: i32, %arg1: i32) -> (i32, i32, i32) {
    %c0_i32 = arith.constant 0 : i32
    %c0_i32_0 = arith.constant 0 : i32
    %c0_i32_1 = arith.constant 0 : i32
    return %arg0, %c0_i32, %c0_i32_0 : i32, i32, i32
  }
  func.func @transform_2(%arg0: i32, %arg1: i32) -> (i32, i32, i32) {
    %c0_i32 = arith.constant 0 : i32
    %c0_i32_0 = arith.constant 0 : i32
    return %arg0, %c0_i32, %arg1 : i32, i32, i32
  }
  func.func @transform_3(%arg0: i32, %arg1: i32) -> (i32, i32, i32) {
    %c0_i32 = arith.constant 0 : i32
    %c0_i32_0 = arith.constant 0 : i32
    return %arg0, %c0_i32, %arg1 : i32, i32, i32
  }
}

module attributes {stable_mosaic.version = 11 : i64} {
  func.func @_conv_pair_pool_kernel(%arg0: i32, %arg1: i32, %arg2: memref<1x8x48xbf16, #tpu.memory_space<vmem>>, %arg3: memref<1x8x1xf32, #tpu.memory_space<vmem>>, %arg4: memref<1x2x48x128xbf16, #tpu.memory_space<vmem>>, %arg5: memref<1x8x128xf32, #tpu.memory_space<vmem>>) attributes {dimension_semantics = [#tpu.dimension_semantics<parallel>, #tpu.dimension_semantics<parallel>], iteration_bounds = array<i64: 2, 1>, scalar_prefetch = 0 : i64, scratch_operands = 0 : i64, tpu.core_type = #tpu.core_type<tc>, window_params = [{transform_indices = @transform_0, window_bounds = array<i64: 1, 8, 48>}, {transform_indices = @transform_1, window_bounds = array<i64: 1, 8, 1>}, {transform_indices = @transform_2, window_bounds = array<i64: 1, 2, 48, 128>}, {transform_indices = @transform_3, window_bounds = array<i64: 1, 8, 128>}]} {
    %c0 = arith.constant 0 : index
    %c0_0 = arith.constant 0 : index
    %c0_1 = arith.constant 0 : index
    %0 = vector.load %arg2[%c0, %c0_0, %c0_1] : memref<1x8x48xbf16, #tpu.memory_space<vmem>>, vector<1x8x48xbf16>
    %1 = vector.shape_cast %0 : vector<1x8x48xbf16> to vector<8x48xbf16>
    %c0_2 = arith.constant 0 : index
    %c0_3 = arith.constant 0 : index
    %c0_4 = arith.constant 0 : index
    %c0_5 = arith.constant 0 : index
    %2 = vector.load %arg4[%c0_2, %c0_3, %c0_4, %c0_5] : memref<1x2x48x128xbf16, #tpu.memory_space<vmem>>, vector<1x1x48x128xbf16>
    %3 = vector.shape_cast %2 : vector<1x1x48x128xbf16> to vector<48x128xbf16>
    %cst = arith.constant dense<0.000000e+00> : vector<8x128xf32>
    %4 = tpu.matmul %1, %3, %cst {dimension_numbers = #tpu.dot_dimension_numbers<[1], [0], [0], [1], [0, 0, 1, 1], [], []>} : vector<8x48xbf16>, vector<48x128xbf16>, vector<8x128xf32> -> vector<8x128xf32>
    %c0_6 = arith.constant 0 : index
    %c1 = arith.constant 1 : index
    %c0_7 = arith.constant 0 : index
    %c0_8 = arith.constant 0 : index
    %5 = vector.load %arg4[%c0_6, %c1, %c0_7, %c0_8] : memref<1x2x48x128xbf16, #tpu.memory_space<vmem>>, vector<1x1x48x128xbf16>
    %6 = vector.shape_cast %5 : vector<1x1x48x128xbf16> to vector<48x128xbf16>
    %cst_9 = arith.constant dense<0.000000e+00> : vector<8x128xf32>
    %7 = tpu.matmul %1, %6, %cst_9 {dimension_numbers = #tpu.dot_dimension_numbers<[1], [0], [0], [1], [0, 0, 1, 1], [], []>} : vector<8x48xbf16>, vector<48x128xbf16>, vector<8x128xf32> -> vector<8x128xf32>
    %8 = arith.maximumf %4, %7 : vector<8x128xf32>
    %c0_10 = arith.constant 0 : index
    %c0_11 = arith.constant 0 : index
    %c0_12 = arith.constant 0 : index
    %9 = vector.load %arg3[%c0_10, %c0_11, %c0_12] : memref<1x8x1xf32, #tpu.memory_space<vmem>>, vector<1x8x1xf32>
    %10 = vector.shape_cast %9 : vector<1x8x1xf32> to vector<8x1xf32>
    %11 = vector.broadcast %10 : vector<8x1xf32> to vector<8x128xf32>
    %12 = arith.addf %8, %11 : vector<8x128xf32>
    %c0_13 = arith.constant 0 : index
    %c0_14 = arith.constant 0 : index
    %c0_15 = arith.constant 0 : index
    %13 = vector.load %arg5[%c0_13, %c0_14, %c0_15] : memref<1x8x128xf32, #tpu.memory_space<vmem>>, vector<1x8x128xf32>
    %14 = vector.shape_cast %13 : vector<1x8x128xf32> to vector<8x128xf32>
    %15 = vector.shape_cast %12 : vector<8x128xf32> to vector<1x8x128xf32>
    tpu.vector_store %arg5[%c0_13, %c0_14, %c0_15], %15 {strides = array<i32>} : memref<1x8x128xf32, #tpu.memory_space<vmem>>, vector<1x8x128xf32>,
    return
  }
  func.func @transform_0(%arg0: i32, %arg1: i32) -> (i32, i32, i32) {
    %c0_i32 = arith.constant 0 : i32
    %c0_i32_0 = arith.constant 0 : i32
    %c0_i32_1 = arith.constant 0 : i32
    return %arg0, %c0_i32, %c0_i32_0 : i32, i32, i32
  }
  func.func @transform_1(%arg0: i32, %arg1: i32) -> (i32, i32, i32) {
    %c0_i32 = arith.constant 0 : i32
    %c0_i32_0 = arith.constant 0 : i32
    %c0_i32_1 = arith.constant 0 : i32
    return %arg0, %c0_i32, %c0_i32_0 : i32, i32, i32
  }
  func.func @transform_2(%arg0: i32, %arg1: i32) -> (i32, i32, i32, i32) {
    %c0_i32 = arith.constant 0 : i32
    %c0_i32_0 = arith.constant 0 : i32
    %c0_i32_1 = arith.constant 0 : i32
    return %arg0, %c0_i32, %c0_i32_0, %arg1 : i32, i32, i32, i32
  }
  func.func @transform_3(%arg0: i32, %arg1: i32) -> (i32, i32, i32) {
    %c0_i32 = arith.constant 0 : i32
    %c0_i32_0 = arith.constant 0 : i32
    return %arg0, %c0_i32, %arg1 : i32, i32, i32
  }
}

</mosaic_0001>

<llo_original>
// kernel: squeeze.5
$region0: #{squeeze.5}
  %s0 = inlined_call_operand.vmem [shape: bf16[1,8,128], index: 0, kind: input, shape index: {}]
  %s1 = inlined_call_operand.vmem [shape: bf16[8,2,2,4,8], index: 1, kind: output, shape index: {}]
  $region1: #{squeeze.5} parent=0
    #allocation0 [shape = 'u8[131072]{0}', space=vmem, size = 0x20000, scoped, tag = 'scoped mem for output reshape']
    #allocation1 [shape = 'u8[4096]{0}', space=vmem, size = 0x1000, scoped, tag = 'scoped mem for input reshape']
    %s3 = smul.u32 4, 2
    %s4 = sshllo.u32 0, %s3
    %s5 = sshrl.u32 %s4, 1
    %s6 = sor.u32 %s4, %s5
    %s7 = sand.u32 %s6, 85
    %s8 = sshrl.u32 %s7, 1
    %s9 = sor.u32 %s7, %s8
    %s10 = sand.u32 51, %s9
    %s11 = sshrl.u32 %s10, 2
    %s12 = sor.u32 %s10, %s11
    %s13 = sand.u32 15, %s12
    %v14 = vld [vmem:[%s0] sm:%s13]
    %v15 = vunpack.c.l.bf16 %v14
    %v16 = vunpack.c.h.bf16 %v14
    %17 = vst [vmem:[#allocation1] sm:%s4] %v15
    %v18 = vld [vmem:[#allocation1] sm:$0xff]
    %vm19 = vcmask 64512
    %20 = vst.msk [vmem:[#allocation0] sm:$0x1] %vm19, %v18
    %s21 = scalar_lea.vmem [#allocation0], 31
    %22 = vst.msk [vmem:[%s21] sm:$0x2] %vm19, %v18
    %s23 = scalar_lea.vmem [#allocation0], 62
    %24 = vst.msk [vmem:[%s23] sm:$0x4] %vm19, %v18
    %s25 = scalar_lea.vmem [#allocation0], 93
    %26 = vst.msk [vmem:[%s25] sm:$0x8] %vm19, %v18
    %s27 = scalar_lea.vmem [#allocation0], 124
    %28 = vst.msk [vmem:[%s27] sm:$0x10] %vm19, %v18
    %s29 = scalar_lea.vmem [#allocation0], 155
    %30 = vst.msk [vmem:[%s29] sm:$0x20] %vm19, %v18
    %s31 = scalar_lea.vmem [#allocation0], 186
    %32 = vst.msk [vmem:[%s31] sm:$0x40] %vm19, %v18
    %s33 = scalar_lea.vmem [#allocation0], 217
    %34 = vst.msk [vmem:[%s33] sm:$0x80] %vm19, %v18
    %v35 = vld [vmem:[#allocation1] sm:$0xff]
    %36 = vrot.lane.b32.xlu0 %v35, 120
    %v37 = vpop.permute.xlu0 %36
    %vm38 = vcmask 64512
    %s39 = scalar_lea.vmem [#allocation0], 1
    %40 = vst.msk [vmem:[%s39] sm:$0x1] %vm38, %v37
    %s41 = scalar_lea.vmem [#allocation0], 32
    %42 = vst.msk [vmem:[%s41] sm:$0x2] %vm38, %v37
    %s43 = scalar_lea.vmem [#allocation0], 63
    %44 = vst.msk [vmem:[%s43] sm:$0x4] %vm38, %v37
    %s45 = scalar_lea.vmem [#allocation0], 94
    %46 = vst.msk [vmem:[%s45] sm:$0x8] %vm38, %v37
    %s47 = scalar_lea.vmem [#allocation0], 125
    %48 = vst.msk [vmem:[%s47] sm:$0x10] %vm38, %v37
    %s49 = scalar_lea.vmem [#allocation0], 156
    %50 = vst.msk [vmem:[%s49] sm:$0x20] %vm38, %v37
    %s51 = scalar_lea.vmem [#allocation0], 187
    %52 = vst.msk [vmem:[%s51] sm:$0x40] %vm38, %v37
    %s53 = scalar_lea.vmem [#allocation0], 218
    %54 = vst.msk [vmem:[%s53] sm:$0x80] %vm38, %v37
    %v55 = vld [vmem:[#allocation1] sm:$0xff]
    %56 = vrot.lane.b32.xlu0 %v55, 112
    %v57 = vpop.permute.xlu0 %56
    %vm58 = vcmask 64512
    %s59 = scalar_lea.vmem [#allocation0], 2
    %60 = vst.msk [vmem:[%s59] sm:$0x1] %vm58, %v57
    %s61 = scalar_lea.vmem [#allocation0], 33
    %62 = vst.msk [vmem:[%s61] sm:$0x2] %vm58, %v57
    %s63 = scalar_lea.vmem [#allocation0], 64
    %64 = vst.msk [vmem:[%s63] sm:$0x4] %vm58, %v57
    %s65 = scalar_lea.vmem [#allocation0], 95
    %66 = vst.msk [vmem:[%s65] sm:$0x8] %vm58, %v57
    %s67 = scalar_lea.vmem [#allocation0], 126
    %68 = vst.msk [vmem:[%s67] sm:$0x10] %vm58, %v57
    %s69 = scalar_lea.vmem [#allocation0], 157
    %70 = vst.msk [vmem:[%s69] sm:$0x20] %vm58, %v57
    %s71 = scalar_lea.vmem [#allocation0], 188
    %72 = vst.msk [vmem:[%s71] sm:$0x40] %vm58, %v57
    %s73 = scalar_lea.vmem [#allocation0], 219
    %74 = vst.msk [vmem:[%s73] sm:$0x80] %vm58, %v57
    %v75 = vld [vmem:[#allocation1] sm:$0xff]
    %76 = vrot.lane.b32.xlu0 %v75, 104
    %v77 = vpop.permute.xlu0 %76
    %vm78 = vcmask 64512
    %s79 = scalar_lea.vmem [#allocation0], 3
    %80 = vst.msk [vmem:[%s79] sm:$0x1] %vm78, %v77
    %s81 = scalar_lea.vmem [#allocation0], 34
    %82 = vst.msk [vmem:[%s81] sm:$0x2] %vm78, %v77
    %s83 = scalar_lea.vmem [#allocation0], 65
    %84 = vst.msk [vmem:[%s83] sm:$0x4] %vm78, %v77
    %s85 = scalar_lea.vmem [#allocation0], 96
    %86 = vst.msk [vmem:[%s85] sm:$0x8] %vm78, %v77
    %s87 = scalar_lea.vmem [#allocation0], 127
    %88 = vst.msk [vmem:[%s87] sm:$0x10] %vm78, %v77
    %s89 = scalar_lea.vmem [#allocation0], 158
    %90 = vst.msk [vmem:[%s89] sm:$0x20] %vm78, %v77
    %s91 = scalar_lea.vmem [#allocation0], 189
    %92 = vst.msk [vmem:[%s91] sm:$0x40] %vm78, %v77
    %s93 = scalar_lea.vmem [#allocation0], 220
    %94 = vst.msk [vmem:[%s93] sm:$0x80] %vm78, %v77
    %v95 = vld [vmem:[#allocation1] sm:$0xff]
    %96 = vrot.lane.b32.xlu0 %v95, 96
    %v97 = vpop.permute.xlu0 %96
    %vm98 = vcmask 64512
    %s99 = scalar_lea.vmem [#allocation0], 8
    %100 = vst.msk [vmem:[%s99] sm:$0x1] %vm98, %v97
    %s101 = scalar_lea.vmem [#allocation0], 39
    %102 = vst.msk [vmem:[%s101] sm:$0x2] %vm98, %v97
    %s103 = scalar_lea.vmem [#allocation0], 70
    %104 = vst.msk [vmem:[%s103] sm:$0x4] %vm98, %v97
    %s105 = scalar_lea.vmem [#allocation0], 101
    %106 = vst.msk [vmem:[%s105] sm:$0x8] %vm98, %v97
    %s107 = scalar_lea.vmem [#allocation0], 132
    %108 = vst.msk [vmem:[%s107] sm:$0x10] %vm98, %v97
    %s109 = scalar_lea.vmem [#allocation0], 163
    %110 = vst.msk [vmem:[%s109] sm:$0x20] %vm98, %v97
    %s111 = scalar_lea.vmem [#allocation0], 194
    %112 = vst.msk [vmem:[%s111] sm:$0x40] %vm98, %v97
    %s113 = scalar_lea.vmem [#allocation0], 225
    %114 = vst.msk [vmem:[%s113] sm:$0x80] %vm98, %v97
    %v115 = vld [vmem:[#allocation1] sm:$0xff]
    %116 = vrot.lane.b32.xlu0 %v115, 88
    %v117 = vpop.permute.xlu0 %116
    %vm118 = vcmask 64512
    %s119 = scalar_lea.vmem [#allocation0], 9
    %120 = vst.msk [vmem:[%s119] sm:$0x1] %vm118, %v117
    %s121 = scalar_lea.vmem [#allocation0], 40
    %122 = vst.msk [vmem:[%s121] sm:$0x2] %vm118, %v117
    %s123 = scalar_lea.vmem [#allocation0], 71
    %124 = vst.msk [vmem:[%s123] sm:$0x4] %vm118, %v117
    %s125 = scalar_lea.vmem [#allocation0], 102
    %126 = vst.msk [vmem:[%s125] sm:$0x8] %vm118, %v117
    %s127 = scalar_lea.vmem [#allocation0], 133
    %128 = vst.msk [vmem:[%s127] sm:$0x10] %vm118, %v117
    %s129 = scalar_lea.vmem [#allocation0], 164
    %130 = vst.msk [vmem:[%s129] sm:$0x20] %vm118, %v117
    %s131 = scalar_lea.vmem [#allocation0], 195
    %132 = vst.msk [vmem:[%s131] sm:$0x40] %vm118, %v117
    %s133 = scalar_lea.vmem [#allocation0], 226
    %134 = vst.msk [vmem:[%s133] sm:$0x80] %vm118, %v117
    %v135 = vld [vmem:[#allocation1] sm:$0xff]
    %136 = vrot.lane.b32.xlu0 %v135, 80
    %v137 = vpop.permute.xlu0 %136
    %vm138 = vcmask 64512
    %s139 = scalar_lea.vmem [#allocation0], 10
    %140 = vst.msk [vmem:[%s139] sm:$0x1] %vm138, %v137
    %s141 = scalar_lea.vmem [#allocation0], 41
    %142 = vst.msk [vmem:[%s141] sm:$0x2] %vm138, %v137
    %s143 = scalar_lea.vmem [#allocation0], 72
    %144 = vst.msk [vmem:[%s143] sm:$0x4] %vm138, %v137
    %s145 = scalar_lea.vmem [#allocation0], 103
    %146 = vst.msk [vmem:[%s145] sm:$0x8] %vm138, %v137
    %s147 = scalar_lea.vmem [#allocation0], 134
    %148 = vst.msk [vmem:[%s147] sm:$0x10] %vm138, %v137
    %s149 = scalar_lea.vmem [#allocation0], 165
    %150 = vst.msk [vmem:[%s149] sm:$0x20] %vm138, %v137
    %s151 = scalar_lea.vmem [#allocation0], 196
    %152 = vst.msk [vmem:[%s151] sm:$0x40] %vm138, %v137
    %s153 = scalar_lea.vmem [#allocation0], 227
    %154 = vst.msk [vmem:[%s153] sm:$0x80] %vm138, %v137
    %v155 = vld [vmem:[#allocation1] sm:$0xff]
    %156 = vrot.lane.b32.xlu0 %v155, 72
    %v157 = vpop.permute.xlu0 %156
    %vm158 = vcmask 64512
    %s159 = scalar_lea.vmem [#allocation0], 11
    %160 = vst.msk [vmem:[%s159] sm:$0x1] %vm158, %v157
    %s161 = scalar_lea.vmem [#allocation0], 42
    %162 = vst.msk [vmem:[%s161] sm:$0x2] %vm158, %v157
    %s163 = scalar_lea.vmem [#allocation0], 73
    %164 = vst.msk [vmem:[%s163] sm:$0x4] %vm158, %v157
    %s165 = scalar_lea.vmem [#allocation0], 104
    %166 = vst.msk [vmem:[%s165] sm:$0x8] %vm158, %v157
    %s167 = scalar_lea.vmem [#allocation0], 135
    %168 = vst.msk [vmem:[%s167] sm:$0x10] %vm158, %v157
    %s169 = scalar_lea.vmem [#allocation0], 166
    %170 = vst.msk [vmem:[%s169] sm:$0x20] %vm158, %v157
    %s171 = scalar_lea.vmem [#allocation0], 197
    %172 = vst.msk [vmem:[%s171] sm:$0x40] %vm158, %v157
    %s173 = scalar_lea.vmem [#allocation0], 228
    %174 = vst.msk [vmem:[%s173] sm:$0x80] %vm158, %v157
    %v175 = vld [vmem:[#allocation1] sm:$0xff]
    %176 = vrot.lane.b32.xlu0 %v175, 64
    %v177 = vpop.permute.xlu0 %176
    %vm178 = vcmask 64512
    %s179 = scalar_lea.vmem [#allocation0], 16
    %180 = vst.msk [vmem:[%s179] sm:$0x1] %vm178, %v177
    %s181 = scalar_lea.vmem [#allocation0], 47
    %182 = vst.msk [vmem:[%s181] sm:$0x2] %vm178, %v177
    %s183 = scalar_lea.vmem [#allocation0], 78
    %184 = vst.msk [vmem:[%s183] sm:$0x4] %vm178, %v177
    %s185 = scalar_lea.vmem [#allocation0], 109
    %186 = vst.msk [vmem:[%s185] sm:$0x8] %vm178, %v177
    %s187 = scalar_lea.vmem [#allocation0], 140
    %188 = vst.msk [vmem:[%s187] sm:$0x10] %vm178, %v177
    %s189 = scalar_lea.vmem [#allocation0], 171
    %190 = vst.msk [vmem:[%s189] sm:$0x20] %vm178, %v177
    %s191 = scalar_lea.vmem [#allocation0], 202
    %192 = vst.msk [vmem:[%s191] sm:$0x40] %vm178, %v177
    %s193 = scalar_lea.vmem [#allocation0], 233
    %194 = vst.msk [vmem:[%s193] sm:$0x80] %vm178, %v177
    %v195 = vld [vmem:[#allocation1] sm:$0xff]
    %196 = vrot.lane.b32.xlu0 %v195, 56
    %v197 = vpop.permute.xlu0 %196
    %vm198 = vcmask 64512
    %s199 = scalar_lea.vmem [#allocation0], 17
    %200 = vst.msk [vmem:[%s199] sm:$0x1] %vm198, %v197
    %s201 = scalar_lea.vmem [#allocation0], 48
    %202 = vst.msk [vmem:[%s201] sm:$0x2] %vm198, %v197
    %s203 = scalar_lea.vmem [#allocation0], 79
    %204 = vst.msk [vmem:[%s203] sm:$0x4] %vm198, %v197
    %s205 = scalar_lea.vmem [#allocation0], 110
    %206 = vst.msk [vmem:[%s205] sm:$0x8] %vm198, %v197
    %s207 = scalar_lea.vmem [#allocation0], 141
    %208 = vst.msk [vmem:[%s207] sm:$0x10] %vm198, %v197
    %s209 = scalar_lea.vmem [#allocation0], 172
    %210 = vst.msk [vmem:[%s209] sm:$0x20] %vm198, %v197
    %s211 = scalar_lea.vmem [#allocation0], 203
    %212 = vst.msk [vmem:[%s211] sm:$0x40] %vm198, %v197
    %s213 = scalar_lea.vmem [#allocation0], 234
    %214 = vst.msk [vmem:[%s213] sm:$0x80] %vm198, %v197
    %v215 = vld [vmem:[#allocation1] sm:$0xff]
    %216 = vrot.lane.b32.xlu0 %v215, 48
    %v217 = vpop.permute.xlu0 %216
    %vm218 = vcmask 64512
    %s219 = scalar_lea.vmem [#allocation0], 18
    %220 = vst.msk [vmem:[%s219] sm:$0x1] %vm218, %v217
    %s221 = scalar_lea.vmem [#allocation0], 49
    %222 = vst.msk [vmem:[%s221] sm:$0x2] %vm218, %v217
    %s223 = scalar_lea.vmem [#allocation0], 80
    %224 = vst.msk [vmem:[%s223] sm:$0x4] %vm218, %v217
    %s225 = scalar_lea.vmem [#allocation0], 111
    %226 = vst.msk [vmem:[%s225] sm:$0x8] %vm218, %v217
    %s227 = scalar_lea.vmem [#allocation0], 142
    %228 = vst.msk [vmem:[%s227] sm:$0x10] %vm218, %v217
    %s229 = scalar_lea.vmem [#allocation0], 173
    %230 = vst.msk [vmem:[%s229] sm:$0x20] %vm218, %v217
    %s231 = scalar_lea.vmem [#allocation0], 204
    %232 = vst.msk [vmem:[%s231] sm:$0x40] %vm218, %v217
    %s233 = scalar_lea.vmem [#allocation0], 235
    %234 = vst.msk [vmem:[%s233] sm:$0x80] %vm218, %v217
    %v235 = vld [vmem:[#allocation1] sm:$0xff]
    %236 = vrot.lane.b32.xlu0 %v235, 40
    %v237 = vpop.permute.xlu0 %236
    %vm238 = vcmask 64512
    %s239 = scalar_lea.vmem [#allocation0], 19
    %240 = vst.msk [vmem:[%s239] sm:$0x1] %vm238, %v237
    %s241 = scalar_lea.vmem [#allocation0], 50
    %242 = vst.msk [vmem:[%s241] sm:$0x2] %vm238, %v237
    %s243 = scalar_lea.vmem [#allocation0], 81
    %244 = vst.msk [vmem:[%s243] sm:$0x4] %vm238, %v237
    %s245 = scalar_lea.vmem [#allocation0], 112
    %246 = vst.msk [vmem:[%s245] sm:$0x8] %vm238, %v237
    %s247 = scalar_lea.vmem [#allocation0], 143
    %248 = vst.msk [vmem:[%s247] sm:$0x10] %vm238, %v237
    %s249 = scalar_lea.vmem [#allocation0], 174
    %250 = vst.msk [vmem:[%s249] sm:$0x20] %vm238, %v237
    %s251 = scalar_lea.vmem [#allocation0], 205
    %252 = vst.msk [vmem:[%s251] sm:$0x40] %vm238, %v237
    %s253 = scalar_lea.vmem [#allocation0], 236
    %254 = vst.msk [vmem:[%s253] sm:$0x80] %vm238, %v237
    %v255 = vld [vmem:[#allocation1] sm:$0xff]
    %256 = vrot.lane.b32.xlu0 %v255, 32
    %v257 = vpop.permute.xlu0 %256
    %vm258 = vcmask 64512
    %s259 = scalar_lea.vmem [#allocation0], 24
    %260 = vst.msk [vmem:[%s259] sm:$0x1] %vm258, %v257
    %s261 = scalar_lea.vmem [#allocation0], 55
    %262 = vst.msk [vmem:[%s261] sm:$0x2] %vm258, %v257
    %s263 = scalar_lea.vmem [#allocation0], 86
    %264 = vst.msk [vmem:[%s263] sm:$0x4] %vm258, %v257
    %s265 = scalar_lea.vmem [#allocation0], 117
    %266 = vst.msk [vmem:[%s265] sm:$0x8] %vm258, %v257
    %s267 = scalar_lea.vmem [#allocation0], 148
    %268 = vst.msk [vmem:[%s267] sm:$0x10] %vm258, %v257
    %s269 = scalar_lea.vmem [#allocation0], 179
    %270 = vst.msk [vmem:[%s269] sm:$0x20] %vm258, %v257
    %s271 = scalar_lea.vmem [#allocation0], 210
    %272 = vst.msk [vmem:[%s271] sm:$0x40] %vm258, %v257
    %s273 = scalar_lea.vmem [#allocation0], 241
    %274 = vst.msk [vmem:[%s273] sm:$0x80] %vm258, %v257
    %v275 = vld [vmem:[#allocation1] sm:$0xff]
    %276 = vrot.lane.b32.xlu0 %v275, 24
    %v277 = vpop.permute.xlu0 %276
    %vm278 = vcmask 64512
    %s279 = scalar_lea.vmem [#allocation0], 25
    %280 = vst.msk [vmem:[%s279] sm:$0x1] %vm278, %v277
    %s281 = scalar_lea.vmem [#allocation0], 56
    %282 = vst.msk [vmem:[%s281] sm:$0x2] %vm278, %v277
    %s283 = scalar_lea.vmem [#allocation0], 87
    %284 = vst.msk [vmem:[%s283] sm:$0x4] %vm278, %v277
    %s285 = scalar_lea.vmem [#allocation0], 118
    %286 = vst.msk [vmem:[%s285] sm:$0x8] %vm278, %v277
    %s287 = scalar_lea.vmem [#allocation0], 149
    %288 = vst.msk [vmem:[%s287] sm:$0x10] %vm278, %v277
    %s289 = scalar_lea.vmem [#allocation0], 180
    %290 = vst.msk [vmem:[%s289] sm:$0x20] %vm278, %v277
    %s291 = scalar_lea.vmem [#allocation0], 211
    %292 = vst.msk [vmem:[%s291] sm:$0x40] %vm278, %v277
    %s293 = scalar_lea.vmem [#allocation0], 242
    %294 = vst.msk [vmem:[%s293] sm:$0x80] %vm278, %v277
    %v295 = vld [vmem:[#allocation1] sm:$0xff]
    %296 = vrot.lane.b32.xlu0 %v295, 16
    %v297 = vpop.permute.xlu0 %296
    %vm298 = vcmask 64512
    %s299 = scalar_lea.vmem [#allocation0], 26
    %300 = vst.msk [vmem:[%s299] sm:$0x1] %vm298, %v297
    %s301 = scalar_lea.vmem [#allocation0], 57
    %302 = vst.msk [vmem:[%s301] sm:$0x2] %vm298, %v297
    %s303 = scalar_lea.vmem [#allocation0], 88
    %304 = vst.msk [vmem:[%s303] sm:$0x4] %vm298, %v297
    %s305 = scalar_lea.vmem [#allocation0], 119
    %306 = vst.msk [vmem:[%s305] sm:$0x8] %vm298, %v297
    %s307 = scalar_lea.vmem [#allocation0], 150
    %308 = vst.msk [vmem:[%s307] sm:$0x10] %vm298, %v297
    %s309 = scalar_lea.vmem [#allocation0], 181
    %310 = vst.msk [vmem:[%s309] sm:$0x20] %vm298, %v297
    %s311 = scalar_lea.vmem [#allocation0], 212
    %312 = vst.msk [vmem:[%s311] sm:$0x40] %vm298, %v297
    %s313 = scalar_lea.vmem [#allocation0], 243
    %314 = vst.msk [vmem:[%s313] sm:$0x80] %vm298, %v297
    %v315 = vld [vmem:[#allocation1] sm:$0xff]
    %316 = vrot.lane.b32.xlu0 %v315, 8
    %v317 = vpop.permute.xlu0 %316
    %vm318 = vcmask 64512
    %s319 = scalar_lea.vmem [#allocation0], 27
    %320 = vst.msk [vmem:[%s319] sm:$0x1] %vm318, %v317
    %s321 = scalar_lea.vmem [#allocation0], 58
    %322 = vst.msk [vmem:[%s321] sm:$0x2] %vm318, %v317
    %s323 = scalar_lea.vmem [#allocation0], 89
    %324 = vst.msk [vmem:[%s323] sm:$0x4] %vm318, %v317
    %s325 = scalar_lea.vmem [#allocation0], 120
    %326 = vst.msk [vmem:[%s325] sm:$0x8] %vm318, %v317
    %s327 = scalar_lea.vmem [#allocation0], 151
    %328 = vst.msk [vmem:[%s327] sm:$0x10] %vm318, %v317
    %s329 = scalar_lea.vmem [#allocation0], 182
    %330 = vst.msk [vmem:[%s329] sm:$0x20] %vm318, %v317
    %s331 = scalar_lea.vmem [#allocation0], 213
    %332 = vst.msk [vmem:[%s331] sm:$0x40] %vm318, %v317
    %s333 = scalar_lea.vmem [#allocation0], 244
    %334 = vst.msk [vmem:[%s333] sm:$0x80] %vm318, %v317
    %s336 = smul.u32 2, 2
    %s337 = sshllo.u32 0, %s336
    %s338 = sshrl.u32 %s336, 1
    %v339 = vld [vmem:[#allocation0] sm:%s337]
    %v340 = vpack.c.bf16 0.0, %v339
    %s341 = sshllo.u32 0, %s338
    %342 = vst [vmem:[%s1] sm:%s341] %v340
    %s343 = scalar_lea.vmem [#allocation0], 8
    %v344 = vld [vmem:[%s343] sm:%s337]
    %v345 = vpack.c.bf16 0.0, %v344
    %s346 = sshllo.u32 0, %s338
    %s347 = scalar_lea.vmem %s1, 2
    %348 = vst [vmem:[%s347] sm:%s346] %v345
    %s349 = scalar_lea.vmem [#allocation0], 16
    %v350 = vld [vmem:[%s349] sm:%s337]
    %v351 = vpack.c.bf16 0.0, %v350
    %s352 = sshllo.u32 0, %s338
    %s353 = smul.addr 2, 2
    %s354 = scalar_lea.vmem %s1, %s353
    %355 = vst [vmem:[%s354] sm:%s352] %v351
    %s356 = scalar_lea.vmem [#allocation0], 24
    %v357 = vld [vmem:[%s356] sm:%s337]
    %v358 = vpack.c.bf16 0.0, %v357
    %s359 = sshllo.u32 0, %s338
    %s360 = smul.addr 2, 3
    %s361 = scalar_lea.vmem %s1, %s360
    %362 = vst [vmem:[%s361] sm:%s359] %v358
    %s363 = scalar_lea.vmem [#allocation0], 32
    %v364 = vld [vmem:[%s363] sm:%s337]
    %v365 = vpack.c.bf16 0.0, %v364
    %s366 = sshllo.u32 0, %s338
    %s367 = smul.addr 2, 4
    %s368 = scalar_lea.vmem %s1, %s367
    %369 = vst [vmem:[%s368] sm:%s366] %v365
    %s370 = scalar_lea.vmem [#allocation0], 40
    %v371 = vld [vmem:[%s370] sm:%s337]
    %v372 = vpack.c.bf16 0.0, %v371
    %s373 = sshllo.u32 0, %s338
    %s374 = smul.addr 2, 5
    %s375 = scalar_lea.vmem %s1, %s374
    %376 = vst [vmem:[%s375] sm:%s373] %v372
    %s377 = scalar_lea.vmem [#allocation0], 48
    %v378 = vld [vmem:[%s377] sm:%s337]
    %v379 = vpack.c.bf16 0.0, %v378
    %s380 = sshllo.u32 0, %s338
    %s381 = smul.addr 2, 6
    %s382 = scalar_lea.vmem %s1, %s381
    %383 = vst [vmem:[%s382] sm:%s380] %v379
    %s384 = scalar_lea.vmem [#allocation0], 56
    %v385 = vld [vmem:[%s384] sm:%s337]
    %v386 = vpack.c.bf16 0.0, %v385
    %s387 = sshllo.u32 0, %s338
    %s388 = smul.addr 2, 7
    %s389 = scalar_lea.vmem %s1, %s388
    %390 = vst [vmem:[%s389] sm:%s387] %v386
    %s391 = scalar_lea.vmem [#allocation0], 64
    %v392 = vld [vmem:[%s391] sm:%s337]
    %v393 = vpack.c.bf16 0.0, %v392
    %s394 = sshllo.u32 0, %s338
    %s395 = smul.addr 2, 8
    %s396 = scalar_lea.vmem %s1, %s395
    %397 = vst [vmem:[%s396] sm:%s394] %v393
    %s398 = scalar_lea.vmem [#allocation0], 72
    %v399 = vld [vmem:[%s398] sm:%s337]
    %v400 = vpack.c.bf16 0.0, %v399
    %s401 = sshllo.u32 0, %s338
    %s402 = smul.addr 2, 9
    %s403 = scalar_lea.vmem %s1, %s402
    %404 = vst [vmem:[%s403] sm:%s401] %v400
    %s405 = scalar_lea.vmem [#allocation0], 80
    %v406 = vld [vmem:[%s405] sm:%s337]
    %v407 = vpack.c.bf16 0.0, %v406
    %s408 = sshllo.u32 0, %s338
    %s409 = smul.addr 2, 10
    %s410 = scalar_lea.vmem %s1, %s409
    %411 = vst [vmem:[%s410] sm:%s408] %v407
    %s412 = scalar_lea.vmem [#allocation0], 88
    %v413 = vld [vmem:[%s412] sm:%s337]
    %v414 = vpack.c.bf16 0.0, %v413
    %s415 = sshllo.u32 0, %s338
    %s416 = smul.addr 2, 11
    %s417 = scalar_lea.vmem %s1, %s416
    %418 = vst [vmem:[%s417] sm:%s415] %v414
    %s419 = scalar_lea.vmem [#allocation0], 96
    %v420 = vld [vmem:[%s419] sm:%s337]
    %v421 = vpack.c.bf16 0.0, %v420
    %s422 = sshllo.u32 0, %s338
    %s423 = smul.addr 2, 12
    %s424 = scalar_lea.vmem %s1, %s423
    %425 = vst [vmem:[%s424] sm:%s422] %v421
    %s426 = scalar_lea.vmem [#allocation0], 104
    %v427 = vld [vmem:[%s426] sm:%s337]
    %v428 = vpack.c.bf16 0.0, %v427
    %s429 = sshllo.u32 0, %s338
    %s430 = smul.addr 2, 13
    %s431 = scalar_lea.vmem %s1, %s430
    %432 = vst [vmem:[%s431] sm:%s429] %v428
    %s433 = scalar_lea.vmem [#allocation0], 112
    %v434 = vld [vmem:[%s433] sm:%s337]
    %v435 = vpack.c.bf16 0.0, %v434
    %s436 = sshllo.u32 0, %s338
    %s437 = smul.addr 2, 14
    %s438 = scalar_lea.vmem %s1, %s437
    %439 = vst [vmem:[%s438] sm:%s436] %v435
    %s440 = scalar_lea.vmem [#allocation0], 120
    %v441 = vld [vmem:[%s440] sm:%s337]
    %v442 = vpack.c.bf16 0.0, %v441
    %s443 = sshllo.u32 0, %s338
    %s444 = smul.addr 2, 15
    %s445 = scalar_lea.vmem %s1, %s444
    %446 = vst [vmem:[%s445] sm:%s443] %v442
    %s447 = scalar_lea.vmem [#allocation0], 128
    %v448 = vld [vmem:[%s447] sm:%s337]
    %v449 = vpack.c.bf16 0.0, %v448
    %s450 = sshllo.u32 0, %s338
    %s451 = smul.addr 2, 16
    %s452 = scalar_lea.vmem %s1, %s451
    %453 = vst [vmem:[%s452] sm:%s450] %v449
    %s454 = scalar_lea.vmem [#allocation0], 136
    %v455 = vld [vmem:[%s454] sm:%s337]
    %v456 = vpack.c.bf16 0.0, %v455
    %s457 = sshllo.u32 0, %s338
    %s458 = smul.addr 2, 17
    %s459 = scalar_lea.vmem %s1, %s458
    %460 = vst [vmem:[%s459] sm:%s457] %v456
    %s461 = scalar_lea.vmem [#allocation0], 144
    %v462 = vld [vmem:[%s461] sm:%s337]
    %v463 = vpack.c.bf16 0.0, %v462
    %s464 = sshllo.u32 0, %s338
    %s465 = smul.addr 2, 18
    %s466 = scalar_lea.vmem %s1, %s465
    %467 = vst [vmem:[%s466] sm:%s464] %v463
    %s468 = scalar_lea.vmem [#allocation0], 152
    %v469 = vld [vmem:[%s468] sm:%s337]
    %v470 = vpack.c.bf16 0.0, %v469
    %s471 = sshllo.u32 0, %s338
    %s472 = smul.addr 2, 19
    %s473 = scalar_lea.vmem %s1, %s472
    %474 = vst [vmem:[%s473] sm:%s471] %v470
    %s475 = scalar_lea.vmem [#allocation0], 160
    %v476 = vld [vmem:[%s475] sm:%s337]
    %v477 = vpack.c.bf16 0.0, %v476
    %s478 = sshllo.u32 0, %s338
    %s479 = smul.addr 2, 20
    %s480 = scalar_lea.vmem %s1, %s479
    %481 = vst [vmem:[%s480] sm:%s478] %v477
    %s482 = scalar_lea.vmem [#allocation0], 168
    %v483 = vld [vmem:[%s482] sm:%s337]
    %v484 = vpack.c.bf16 0.0, %v483
    %s485 = sshllo.u32 0, %s338
    %s486 = smul.addr 2, 21
    %s487 = scalar_lea.vmem %s1, %s486
    %488 = vst [vmem:[%s487] sm:%s485] %v484
    %s489 = scalar_lea.vmem [#allocation0], 176
    %v490 = vld [vmem:[%s489] sm:%s337]
    %v491 = vpack.c.bf16 0.0, %v490
    %s492 = sshllo.u32 0, %s338
    %s493 = smul.addr 2, 22
    %s494 = scalar_lea.vmem %s1, %s493
    %495 = vst [vmem:[%s494] sm:%s492] %v491
    %s496 = scalar_lea.vmem [#allocation0], 184
    %v497 = vld [vmem:[%s496] sm:%s337]
    %v498 = vpack.c.bf16 0.0, %v497
    %s499 = sshllo.u32 0, %s338
    %s500 = smul.addr 2, 23
    %s501 = scalar_lea.vmem %s1, %s500
    %502 = vst [vmem:[%s501] sm:%s499] %v498
    %s503 = scalar_lea.vmem [#allocation0], 192
    %v504 = vld [vmem:[%s503] sm:%s337]
    %v505 = vpack.c.bf16 0.0, %v504
    %s506 = sshllo.u32 0, %s338
    %s507 = smul.addr 2, 24
    %s508 = scalar_lea.vmem %s1, %s507
    %509 = vst [vmem:[%s508] sm:%s506] %v505
    %s510 = scalar_lea.vmem [#allocation0], 200
    %v511 = vld [vmem:[%s510] sm:%s337]
    %v512 = vpack.c.bf16 0.0, %v511
    %s513 = sshllo.u32 0, %s338
    %s514 = smul.addr 2, 25
    %s515 = scalar_lea.vmem %s1, %s514
    %516 = vst [vmem:[%s515] sm:%s513] %v512
    %s517 = scalar_lea.vmem [#allocation0], 208
    %v518 = vld [vmem:[%s517] sm:%s337]
    %v519 = vpack.c.bf16 0.0, %v518
    %s520 = sshllo.u32 0, %s338
    %s521 = smul.addr 2, 26
    %s522 = scalar_lea.vmem %s1, %s521
    %523 = vst [vmem:[%s522] sm:%s520] %v519
    %s524 = scalar_lea.vmem [#allocation0], 216
    %v525 = vld [vmem:[%s524] sm:%s337]
    %v526 = vpack.c.bf16 0.0, %v525
    %s527 = sshllo.u32 0, %s338
    %s528 = smul.addr 2, 27
    %s529 = scalar_lea.vmem %s1, %s528
    %530 = vst [vmem:[%s529] sm:%s527] %v526
    %s531 = scalar_lea.vmem [#allocation0], 224
    %v532 = vld [vmem:[%s531] sm:%s337]
    %v533 = vpack.c.bf16 0.0, %v532
    %s534 = sshllo.u32 0, %s338
    %s535 = smul.addr 2, 28
    %s536 = scalar_lea.vmem %s1, %s535
    %537 = vst [vmem:[%s536] sm:%s534] %v533
    %s538 = scalar_lea.vmem [#allocation0], 232
    %v539 = vld [vmem:[%s538] sm:%s337]
    %v540 = vpack.c.bf16 0.0, %v539
    %s541 = sshllo.u32 0, %s338
    %s542 = smul.addr 2, 29
    %s543 = scalar_lea.vmem %s1, %s542
    %544 = vst [vmem:[%s543] sm:%s541] %v540
    %s545 = scalar_lea.vmem [#allocation0], 240
    %v546 = vld [vmem:[%s545] sm:%s337]
    %v547 = vpack.c.bf16 0.0, %v546
    %s548 = sshllo.u32 0, %s338
    %s549 = smul.addr 2, 30
    %s550 = scalar_lea.vmem %s1, %s549
    %551 = vst [vmem:[%s550] sm:%s548] %v547
    %s552 = scalar_lea.vmem [#allocation0], 248
    %v553 = vld [vmem:[%s552] sm:%s337]
    %v554 = vpack.c.bf16 0.0, %v553
    %s555 = sshllo.u32 0, %s338
    %s556 = smul.addr 2, 31
    %s557 = scalar_lea.vmem %s1, %s556
    %558 = vst [vmem:[%s557] sm:%s555] %v554

// kernel: a_call__.2
$region0: #{a_call__.2}
  #allocation0 [shape = 'u32[]', space=smem, size = 0x4, offset = 0x4, fixed_abs, tag = 'smem constant byte address 0x4 - core index']
  #allocation1 [shape = 'u32[144,128]{1,0:T(1,128)}', space=vmem, size = 0x12000, scoped, tag = 'internal scratch']
  %s0 = inlined_call_operand.vmem [shape: bf16[2,8,48], index: 0, kind: input, shape index: {}]
  %s1 = inlined_call_operand.vmem [shape: f32[2,8,1], index: 1, kind: input, shape index: {}]
  %s2 = inlined_call_operand.vmem [shape: bf16[2,48,128], index: 2, kind: input, shape index: {}]
  %s3 = inlined_call_operand.vmem [shape: bf16[2,8,128], index: 3, kind: output, shape index: {}]
  %s4 = sld [smem:[#allocation0]]
  $region45: #{a_call__.2} parent=0
    _
  %s6 = ssub.s32 1, %s4
  %s7 = scalar_select 0, %s6, %s4
  loop: start=0, step=1, limit=4
  $region2: #{a_call__.2} parent=0 // loop_pre_header
    _
  $region3: #{a_call__.2} parent=0 // loop_header
    %s9 = sphi 0, %s13
    %p10 = scmp.ge.s32.totalorder %s9, 4
    %s16 = sphi 0, %s28
    %s17 = sphi 0, %s24
    %s18 = sphi 0, %s16
    %s19 = sphi 0, %s17
    %s20 = sphi 0, %s18
    %s21 = sphi 0, %s19
    %s31 = sphi 0, %s33
    %s34 = sphi 0, %s31
    %s35 = sphi 0, %s34
    %s51 = sphi 0, %s35
    %s57 = sphi 0, %s59
    %s60 = sphi 0, %s57
    %s61 = sphi 0, %s60
    %s77 = sphi 0, %s61
    %s85 = sphi 0, %s87
    %s88 = sphi 0, %s85
    %s89 = sphi 0, %s88
    %s105 = sphi 0, %s89
    %s113 = sphi 0, %s115
    %s116 = sphi 0, %s113
    %s117 = sphi 0, %s116
    %s133 = sphi 0, %s117
  $region4: #{a_call__.2} parent=0 // loop_header_branch
    %12 = sbr.rel (%p10) target = $region8
  $region5: #{a_call__.2} parent=0 // loop_body
    %s14 = ssub.s32 %s9, 1
    %s15 = ssub.s32 %s9, 2
    %s22 = sadd.s32 1, %s17
    %p23 = scmp.ge.s32.totalorder %s22, 1
    %s24 = scalar_select %p23, 0, %s22
    %s25 = sadd.s32 1, %s16
    %s26 = scalar_select %p23, %s25, %s16
    %p27 = scmp.ge.s32.totalorder %s26, 2
    %s28 = scalar_select %p27, 0, %s26
    %s29 = ssub.s32 %s16, %s28
    %p30 = scmp.eq.s32.totalorder %s29, 0
    %s32 = sadd.s32 %s31, 1
    %s33 = scalar_select %p30, %s31, %s32
    %p36 = pneg %p30
    %p37 = scmp.eq.s32.totalorder %s9, 1
    %p38 = por %p36, %p37
    %p39 = scmp.ne.s32.totalorder %s31, %s34
    %p40 = scmp.eq.s32.totalorder %s9, 0
    %p41 = por %p39, %p40
    %p42 = scmp.ne.s32.totalorder %s31, %s34
    %p43 = scmp.eq.s32.totalorder %s14, 1
    %p44 = por %p42, %p43
    %p45 = scmp.ne.s32.totalorder %s34, %s35
    %p46 = scmp.eq.s32.totalorder %s14, 0
    %p47 = por %p45, %p46
    %p48 = scmp.ne.s32.totalorder %s34, %s35
    %p49 = scmp.eq.s32.totalorder %s15, 1
    %p50 = por %p48, %p49
    %p52 = scmp.ne.s32.totalorder %s35, %s51
    %p53 = scmp.eq.s32.totalorder %s15, 0
    %p54 = por %p52, %p53
    %s55 = ssub.s32 %s16, %s28
    %p56 = scmp.eq.s32.totalorder %s55, 0
    %s58 = sadd.s32 %s57, 1
    %s59 = scalar_select %p56, %s57, %s58
    %p62 = pneg %p56
    %p63 = scmp.eq.s32.totalorder %s9, 1
    %p64 = por %p62, %p63
    %p65 = scmp.ne.s32.totalorder %s57, %s60
    %p66 = scmp.eq.s32.totalorder %s9, 0
    %p67 = por %p65, %p66
    %p68 = scmp.ne.s32.totalorder %s57, %s60
    %p69 = scmp.eq.s32.totalorder %s14, 1
    %p70 = por %p68, %p69
    %p71 = scmp.ne.s32.totalorder %s60, %s61
    %p72 = scmp.eq.s32.totalorder %s14, 0
    %p73 = por %p71, %p72
    %p74 = scmp.ne.s32.totalorder %s60, %s61
    %p75 = scmp.eq.s32.totalorder %s15, 1
    %p76 = por %p74, %p75
    %p78 = scmp.ne.s32.totalorder %s61, %s77
    %p79 = scmp.eq.s32.totalorder %s15, 0
    %p80 = por %p78, %p79
    %s81 = ssub.s32 %s16, %s28
    %s82 = ssub.s32 %s17, %s24
    %s83 = sor.u32 %s81, %s82
    %p84 = scmp.eq.s32.totalorder %s83, 0
    %s86 = sadd.s32 %s85, 1
    %s87 = scalar_select %p84, %s85, %s86
    %p90 = pneg %p84
    %p91 = scmp.eq.s32.totalorder %s9, 1
    %p92 = por %p90, %p91
    %p93 = scmp.ne.s32.totalorder %s85, %s88
    %p94 = scmp.eq.s32.totalorder %s9, 0
    %p95 = por %p93, %p94
    %p96 = scmp.ne.s32.totalorder %s85, %s88
    %p97 = scmp.eq.s32.totalorder %s14, 1
    %p98 = por %p96, %p97
    %p99 = scmp.ne.s32.totalorder %s88, %s89
    %p100 = scmp.eq.s32.totalorder %s14, 0
    %p101 = por %p99, %p100
    %p102 = scmp.ne.s32.totalorder %s88, %s89
    %p103 = scmp.eq.s32.totalorder %s15, 1
    %p104 = por %p102, %p103
    %p106 = scmp.ne.s32.totalorder %s89, %s105
    %p107 = scmp.eq.s32.totalorder %s15, 0
    %p108 = por %p106, %p107
    %s109 = ssub.s32 %s16, %s28
    %s110 = ssub.s32 %s17, %s24
    %s111 = sor.u32 %s109, %s110
    %p112 = scmp.eq.s32.totalorder %s111, 0
    %s114 = sadd.s32 %s113, 1
    %s115 = scalar_select %p112, %s113, %s114
    %p118 = pneg %p112
    %p119 = scmp.eq.s32.totalorder %s9, 1
    %p120 = por %p118, %p119
    %p121 = scmp.ne.s32.totalorder %s113, %s116
    %p122 = scmp.eq.s32.totalorder %s9, 0
    %p123 = por %p121, %p122
    %p124 = scmp.ne.s32.totalorder %s113, %s116
    %p125 = scmp.eq.s32.totalorder %s14, 1
    %p126 = por %p124, %p125
    %p127 = scmp.ne.s32.totalorder %s116, %s117
    %p128 = scmp.eq.s32.totalorder %s14, 0
    %p129 = por %p127, %p128
    %p130 = scmp.ne.s32.totalorder %s116, %s117
    %p131 = scmp.eq.s32.totalorder %s15, 1
    %p132 = por %p130, %p131
    %p134 = scmp.ne.s32.totalorder %s117, %s133
    %p135 = scmp.eq.s32.totalorder %s15, 0
    %p136 = por %p134, %p135
    %p137 = scmp.le.s32.totalorder 1, %s9
    %p138 = scmp.lt.s32.totalorder %s9, 3
    %p139 = pnand %p137, %p138
    %p140 = pneg %p139
    // Predicated region
    $region9: #{a_call__.2} parent=5 // pred_check
      _
    $region10: #{a_call__.2} parent=5 // pred_check_branch
      %142 = sbr.rel (%p139) target = $region12
    $region11: #{a_call__.2} parent=5 // pred_region
      %s143 = ssub.s32 %s9, 1
    $region12: #{a_call__.2} parent=5 // pred_fallthru
      _
    %p144 = scmp.lt.s32.totalorder %s9, 2
    // Predicated region
    $region13: #{a_call__.2} parent=5 // pred_check
      %p145 = pneg %p144
    $region14: #{a_call__.2} parent=5 // pred_check_branch
      %147 = sbr.rel (%p145) target = $region16
    $region15: #{a_call__.2} parent=5 // pred_region
      // Predicated region
      $region17: #{a_call__.2} parent=15 // pred_check
        %p148 = pneg %p41
      $region18: #{a_call__.2} parent=15 // pred_check_branch
        %150 = sbr.rel (%p148) target = $region20
      $region19: #{a_call__.2} parent=15 // pred_region
        %p151 = scmp.lt.s32.totalorder %s16, 1
        %s152 = scalar_select %p151, %s16, 1
        %s153 = smul.addr %s152, 4
        %s154 = scalar_lea.vmem %s0, %s153
      $region20: #{a_call__.2} parent=15 // pred_fallthru
        _
      // Predicated region
      $region21: #{a_call__.2} parent=15 // pred_check
        %p155 = pneg %p67
      $region22: #{a_call__.2} parent=15 // pred_check_branch
        %157 = sbr.rel (%p155) target = $region24
      $region23: #{a_call__.2} parent=15 // pred_region
        %p158 = scmp.lt.s32.totalorder %s16, 1
        %s159 = scalar_select %p158, %s16, 1
        %s160 = smul.addr %s159, 8
        %s161 = scalar_lea.vmem %s1, %s160
      $region24: #{a_call__.2} parent=15 // pred_fallthru
        _
      // Predicated region
      $region25: #{a_call__.2} parent=15 // pred_check
        %p162 = pneg %p95
      $region26: #{a_call__.2} parent=15 // pred_check_branch
        %164 = sbr.rel (%p162) target = $region28
      $region27: #{a_call__.2} parent=15 // pred_region
        %p165 = scmp.lt.s32.totalorder %s16, 1
        %s166 = scalar_select %p165, %s16, 1
        %p167 = scmp.lt.s32.totalorder %s17, 0
        %s168 = scalar_select %p167, %s17, 0
        %s169 = smul.addr %s166, 6
        %s170 = sadd.s32 %s168, %s169
        %s171 = smul.addr %s170, 4
        %s172 = scalar_lea.vmem %s2, %s171
      $region28: #{a_call__.2} parent=15 // pred_fallthru
        _
    $region16: #{a_call__.2} parent=5 // pred_fallthru
      _
    %p173 = scmp.le.s32.totalorder 1, %s9
    %p174 = scmp.lt.s32.totalorder %s9, 3
    %p175 = pnand %p173, %p174
    %p176 = pneg %p175
    // Predicated region
    $region29: #{a_call__.2} parent=5 // pred_check
      _
    $region30: #{a_call__.2} parent=5 // pred_check_branch
      %178 = sbr.rel (%p175) target = $region32
    $region31: #{a_call__.2} parent=5 // pred_region
      %s179 = ssub.s32 %s9, 1
      %p180 = scmp.lt.s32.totalorder %s18, 1
      %s181 = scalar_select %p180, %s18, 1
      %s182 = smul.addr %s181, 4
      %s183 = scalar_lea.vmem %s0, %s182
      %p184 = pneg %p47
      %p185 = pneg %p44
      %p186 = scmp.lt.s32.totalorder %s18, 1
      %s187 = scalar_select %p186, %s18, 1
      %s188 = smul.addr %s187, 8
      %s189 = scalar_lea.vmem %s1, %s188
      %p190 = pneg %p73
      %p191 = pneg %p70
      %p192 = scmp.lt.s32.totalorder %s18, 1
      %s193 = scalar_select %p192, %s18, 1
      %p194 = scmp.lt.s32.totalorder %s19, 0
      %s195 = scalar_select %p194, %s19, 0
      %s196 = smul.addr %s193, 6
      %s197 = sadd.s32 %s195, %s196
      %s198 = smul.addr %s197, 4
      %s199 = scalar_lea.vmem %s2, %s198
      %p200 = pneg %p101
      %p201 = pneg %p98
      %p202 = pneg %p129
      %p203 = pneg %p126
      %p204 = scmp.lt.s32.totalorder %s18, 1
      %s205 = scalar_select %p204, %s18, 1
      %p206 = scmp.lt.s32.totalorder %s19, 0
      %s207 = scalar_select %p206, %s19, 0
      %s208 = sadd.s32 %s207, %s205
      %s209 = smul.addr %s208, 4
      %s210 = scalar_lea.vmem %s3, %s209
      %p211 = scmp.lt.s32.totalorder %s18, 1
      %s212 = scalar_select %p211, %s18, 1
      %s213 = smul.addr %s212, 4
      %s214 = scalar_lea.vmem %s0, %s213
      %p215 = scmp.lt.s32.totalorder %s18, 1
      %s216 = scalar_select %p215, %s18, 1
      %s217 = smul.addr %s216, 8
      %s218 = scalar_lea.vmem %s1, %s217
      %p219 = scmp.lt.s32.totalorder %s18, 1
      %s220 = scalar_select %p219, %s18, 1
      %p221 = scmp.lt.s32.totalorder %s19, 0
      %s222 = scalar_select %p221, %s19, 0
      %s223 = smul.addr %s220, 6
      %s224 = sadd.s32 %s222, %s223
      %s225 = smul.addr %s224, 4
      %s226 = scalar_lea.vmem %s2, %s225
      %p227 = scmp.lt.s32.totalorder %s18, 1
      %s228 = scalar_select %p227, %s18, 1
      %p229 = scmp.lt.s32.totalorder %s19, 0
      %s230 = scalar_select %p229, %s19, 0
      %s231 = sadd.s32 %s230, %s228
      %s232 = smul.addr %s231, 4
      %s233 = scalar_lea.vmem %s3, %s232
      %v235 = vld [vmem:[%s214] sm:$0xf]
      %v236 = vld [vmem:[%s226] sm:$0xf]
      %v237 = vld [vmem:[%s226 + $0x4] sm:$0xf]
      %v238 = vld [vmem:[%s226 + $0x8] sm:$0xf]
      %v239 = vld [vmem:[%s226 + $0xc] sm:$0xf]
      %v240 = vld [vmem:[%s226 + $0x10] sm:$0xf]
      %v241 = vld [vmem:[%s226 + $0x14] sm:$0xf]
      %v242 = vld [vmem:[%s218] sm:$0xff]
      %244 = vset.pattern.permute.xlu0 0
      %245 = vperm.xlu0 %244, %v242
      %v246 = vpop.permute.xlu0 %245
      %v254 = vunpack.c.l.b16 %v236
      %v255 = vunpack.c.l.b16 %v237
      %v256 = vunpack.c.l.b16 %v238
      %v257 = vunpack.c.l.b16 %v239
      %v258 = vunpack.c.l.b16 %v240
      %v259 = vunpack.c.l.b16 %v241
      %v260 = vpack.c.b16 %v255, %v254
      %v261 = vpack.c.b16 %v257, %v256
      %v262 = vpack.c.b16 %v259, %v258
      %vm266 = vcmask 392192
      %v268 = vsel %vm266, %v235, 0
      %270 = vmatprep.subr.bf16.mxu0 0
      %271 = vmatpush1.bf16.msra.mxu0 %v260
      %272 = vmatprep.subr.bf16.mxu0 0
      %273 = vmatpush1.bf16.msra.mxu0 %v261
      %274 = vmatprep.subr.bf16.mxu0 0
      %275 = vmatpush1.bf16.msra.mxu0 %v262
      %276 = vmatprep.subr.bf16.mxu0 0
      %277 = vmatpush1.bf16.msra.mxu0 0
      %278 = vmatprep.subr.bf16.mxu0 0
      %279 = vmatpush1.bf16.msra.mxu0 0
      %280 = vmatprep.subr.bf16.mxu0 0
      %281 = vmatpush1.bf16.msra.mxu0 0
      %282 = vmatprep.subr.bf16.mxu0 0
      %283 = vmatpush1.bf16.msra.mxu0 0
      %284 = vmatprep.subr.bf16.mxu0 0
      %285 = vmatpush1.bf16.msra.mxu0 0
      %286 = vmatprep.subr.bf16.mxu0 0
      %287 = vmatpush1.bf16.msra.mxu0 0
      %288 = vmatprep.subr.bf16.mxu0 0
      %289 = vmatpush1.bf16.msra.mxu0 0
      %290 = vmatprep.subr.bf16.mxu0 0
      %291 = vmatpush1.bf16.msra.mxu0 0
      %292 = vmatprep.subr.bf16.mxu0 0
      %293 = vmatpush1.bf16.msra.mxu0 0
      %294 = vmatprep.subr.bf16.mxu0 0
      %295 = vmatpush1.bf16.msra.mxu0 0
      %296 = vmatprep.subr.bf16.mxu0 0
      %297 = vmatpush1.bf16.msra.mxu0 0
      %298 = vmatprep.subr.bf16.mxu0 0
      %299 = vmatpush1.bf16.msra.mxu0 0
      %300 = vmatprep.subr.bf16.mxu0 0
      %301 = vmatpush1.bf16.msra.mxu0 0
      %302 = vmatprep.mubr.bf16.mxu0 0
      %303 = vmatmul.mubr.bf16.gmra.mrb[0].mxu0 %v268
      %v304 = vpop.f32.mrb[0].mxu0
      %v305 = vadd.f32 %v246, %v304
      %v306 = vpop.f32.mrb[0].mxu0
      %v307 = vpop.f32.mrb[0].mxu0
      %v308 = vpop.f32.mrb[0].mxu0
      %309 = vdwg.mxu0
      %v310 = vpack.c.bf16 %v305, %v305
      %311 = vst [vmem:[%s233] sm:$0xf] %v310
      %p312 = scmp.lt.s32.totalorder %s18, 1
      %s313 = scalar_select %p312, %s18, 1
      %p314 = scmp.lt.s32.totalorder %s19, 0
      %s315 = scalar_select %p314, %s19, 0
      %s316 = sadd.s32 %s315, %s313
      %s317 = smul.addr %s316, 4
      %s318 = scalar_lea.vmem %s3, %s317
      // Predicated region
      $region33: #{a_call__.2} parent=31 // pred_check
        %p319 = pneg %p126
      $region34: #{a_call__.2} parent=31 // pred_check_branch
        %321 = sbr.rel (%p319) target = $region36
      $region35: #{a_call__.2} parent=31 // pred_region
        _
      $region36: #{a_call__.2} parent=31 // pred_fallthru
        _
    $region32: #{a_call__.2} parent=5 // pred_fallthru
      _
    %p322 = scmp.le.s32.totalorder 2, %s9
    // Predicated region
    $region37: #{a_call__.2} parent=5 // pred_check
      %p323 = pneg %p322
    $region38: #{a_call__.2} parent=5 // pred_check_branch
      %325 = sbr.rel (%p323) target = $region40
    $region39: #{a_call__.2} parent=5 // pred_region
      %s326 = ssub.s32 %s9, 2
      // Predicated region
      $region41: #{a_call__.2} parent=39 // pred_check
        %p327 = pneg %p132
      $region42: #{a_call__.2} parent=39 // pred_check_branch
        %329 = sbr.rel (%p327) target = $region44
      $region43: #{a_call__.2} parent=39 // pred_region
        %p330 = scmp.lt.s32.totalorder %s20, 1
        %s331 = scalar_select %p330, %s20, 1
        %p332 = scmp.lt.s32.totalorder %s21, 0
        %s333 = scalar_select %p332, %s21, 0
        %s334 = sadd.s32 %s333, %s331
        %s335 = smul.addr %s334, 4
        %s336 = scalar_lea.vmem %s3, %s335
      $region44: #{a_call__.2} parent=39 // pred_fallthru
        _
    $region40: #{a_call__.2} parent=5 // pred_fallthru
      _
  $region6: #{a_call__.2} parent=0 // loop_footer
    %s13 = sadd.s32 1, %s9
  $region7: #{a_call__.2} parent=0 // loop_footer_branch
    %8 = sbr.rel target = $region3
  $region8: #{a_call__.2} parent=0 // loop_exit
    _

// kernel: a_call__.3
$region0: #{a_call__.3}
  #allocation0 [shape = 'u32[]', space=smem, size = 0x4, offset = 0x4, fixed_abs, tag = 'smem constant byte address 0x4 - core index']
  #allocation1 [shape = 'u32[144,128]{1,0:T(1,128)}', space=vmem, size = 0x12000, scoped, tag = 'internal scratch']
  %s0 = inlined_call_operand.vmem [shape: bf16[2,8,48], index: 0, kind: input, shape index: {}]
  %s1 = inlined_call_operand.vmem [shape: f32[2,8,1], index: 1, kind: input, shape index: {}]
  %s2 = inlined_call_operand.vmem [shape: bf16[2,2,48,128], index: 2, kind: input, shape index: {}]
  %s3 = inlined_call_operand.vmem [shape: f32[2,8,128], index: 3, kind: output, shape index: {}]
  %s4 = sld [smem:[#allocation0]]
  $region45: #{a_call__.3} parent=0
    _
  %s6 = ssub.s32 1, %s4
  %s7 = scalar_select 0, %s6, %s4
  loop: start=0, step=1, limit=4
  $region2: #{a_call__.3} parent=0 // loop_pre_header
    _
  $region3: #{a_call__.3} parent=0 // loop_header
    %s9 = sphi 0, %s13
    %p10 = scmp.ge.s32.totalorder %s9, 4
    %s16 = sphi 0, %s28
    %s17 = sphi 0, %s24
    %s18 = sphi 0, %s16
    %s19 = sphi 0, %s17
    %s20 = sphi 0, %s18
    %s21 = sphi 0, %s19
    %s31 = sphi 0, %s33
    %s34 = sphi 0, %s31
    %s35 = sphi 0, %s34
    %s51 = sphi 0, %s35
    %s57 = sphi 0, %s59
    %s60 = sphi 0, %s57
    %s61 = sphi 0, %s60
    %s77 = sphi 0, %s61
    %s85 = sphi 0, %s87
    %s88 = sphi 0, %s85
    %s89 = sphi 0, %s88
    %s105 = sphi 0, %s89
    %s113 = sphi 0, %s115
    %s116 = sphi 0, %s113
    %s117 = sphi 0, %s116
    %s133 = sphi 0, %s117
  $region4: #{a_call__.3} parent=0 // loop_header_branch
    %12 = sbr.rel (%p10) target = $region8
  $region5: #{a_call__.3} parent=0 // loop_body
    %s14 = ssub.s32 %s9, 1
    %s15 = ssub.s32 %s9, 2
    %s22 = sadd.s32 1, %s17
    %p23 = scmp.ge.s32.totalorder %s22, 1
    %s24 = scalar_select %p23, 0, %s22
    %s25 = sadd.s32 1, %s16
    %s26 = scalar_select %p23, %s25, %s16
    %p27 = scmp.ge.s32.totalorder %s26, 2
    %s28 = scalar_select %p27, 0, %s26
    %s29 = ssub.s32 %s16, %s28
    %p30 = scmp.eq.s32.totalorder %s29, 0
    %s32 = sadd.s32 %s31, 1
    %s33 = scalar_select %p30, %s31, %s32
    %p36 = pneg %p30
    %p37 = scmp.eq.s32.totalorder %s9, 1
    %p38 = por %p36, %p37
    %p39 = scmp.ne.s32.totalorder %s31, %s34
    %p40 = scmp.eq.s32.totalorder %s9, 0
    %p41 = por %p39, %p40
    %p42 = scmp.ne.s32.totalorder %s31, %s34
    %p43 = scmp.eq.s32.totalorder %s14, 1
    %p44 = por %p42, %p43
    %p45 = scmp.ne.s32.totalorder %s34, %s35
    %p46 = scmp.eq.s32.totalorder %s14, 0
    %p47 = por %p45, %p46
    %p48 = scmp.ne.s32.totalorder %s34, %s35
    %p49 = scmp.eq.s32.totalorder %s15, 1
    %p50 = por %p48, %p49
    %p52 = scmp.ne.s32.totalorder %s35, %s51
    %p53 = scmp.eq.s32.totalorder %s15, 0
    %p54 = por %p52, %p53
    %s55 = ssub.s32 %s16, %s28
    %p56 = scmp.eq.s32.totalorder %s55, 0
    %s58 = sadd.s32 %s57, 1
    %s59 = scalar_select %p56, %s57, %s58
    %p62 = pneg %p56
    %p63 = scmp.eq.s32.totalorder %s9, 1
    %p64 = por %p62, %p63
    %p65 = scmp.ne.s32.totalorder %s57, %s60
    %p66 = scmp.eq.s32.totalorder %s9, 0
    %p67 = por %p65, %p66
    %p68 = scmp.ne.s32.totalorder %s57, %s60
    %p69 = scmp.eq.s32.totalorder %s14, 1
    %p70 = por %p68, %p69
    %p71 = scmp.ne.s32.totalorder %s60, %s61
    %p72 = scmp.eq.s32.totalorder %s14, 0
    %p73 = por %p71, %p72
    %p74 = scmp.ne.s32.totalorder %s60, %s61
    %p75 = scmp.eq.s32.totalorder %s15, 1
    %p76 = por %p74, %p75
    %p78 = scmp.ne.s32.totalorder %s61, %s77
    %p79 = scmp.eq.s32.totalorder %s15, 0
    %p80 = por %p78, %p79
    %s81 = ssub.s32 %s16, %s28
    %s82 = ssub.s32 %s17, %s24
    %s83 = sor.u32 %s81, %s82
    %p84 = scmp.eq.s32.totalorder %s83, 0
    %s86 = sadd.s32 %s85, 1
    %s87 = scalar_select %p84, %s85, %s86
    %p90 = pneg %p84
    %p91 = scmp.eq.s32.totalorder %s9, 1
    %p92 = por %p90, %p91
    %p93 = scmp.ne.s32.totalorder %s85, %s88
    %p94 = scmp.eq.s32.totalorder %s9, 0
    %p95 = por %p93, %p94
    %p96 = scmp.ne.s32.totalorder %s85, %s88
    %p97 = scmp.eq.s32.totalorder %s14, 1
    %p98 = por %p96, %p97
    %p99 = scmp.ne.s32.totalorder %s88, %s89
    %p100 = scmp.eq.s32.totalorder %s14, 0
    %p101 = por %p99, %p100
    %p102 = scmp.ne.s32.totalorder %s88, %s89
    %p103 = scmp.eq.s32.totalorder %s15, 1
    %p104 = por %p102, %p103
    %p106 = scmp.ne.s32.totalorder %s89, %s105
    %p107 = scmp.eq.s32.totalorder %s15, 0
    %p108 = por %p106, %p107
    %s109 = ssub.s32 %s16, %s28
    %s110 = ssub.s32 %s17, %s24
    %s111 = sor.u32 %s109, %s110
    %p112 = scmp.eq.s32.totalorder %s111, 0
    %s114 = sadd.s32 %s113, 1
    %s115 = scalar_select %p112, %s113, %s114
    %p118 = pneg %p112
    %p119 = scmp.eq.s32.totalorder %s9, 1
    %p120 = por %p118, %p119
    %p121 = scmp.ne.s32.totalorder %s113, %s116
    %p122 = scmp.eq.s32.totalorder %s9, 0
    %p123 = por %p121, %p122
    %p124 = scmp.ne.s32.totalorder %s113, %s116
    %p125 = scmp.eq.s32.totalorder %s14, 1
    %p126 = por %p124, %p125
    %p127 = scmp.ne.s32.totalorder %s116, %s117
    %p128 = scmp.eq.s32.totalorder %s14, 0
    %p129 = por %p127, %p128
    %p130 = scmp.ne.s32.totalorder %s116, %s117
    %p131 = scmp.eq.s32.totalorder %s15, 1
    %p132 = por %p130, %p131
    %p134 = scmp.ne.s32.totalorder %s117, %s133
    %p135 = scmp.eq.s32.totalorder %s15, 0
    %p136 = por %p134, %p135
    %p137 = scmp.le.s32.totalorder 1, %s9
    %p138 = scmp.lt.s32.totalorder %s9, 3
    %p139 = pnand %p137, %p138
    %p140 = pneg %p139
    // Predicated region
    $region9: #{a_call__.3} parent=5 // pred_check
      _
    $region10: #{a_call__.3} parent=5 // pred_check_branch
      %142 = sbr.rel (%p139) target = $region12
    $region11: #{a_call__.3} parent=5 // pred_region
      %s143 = ssub.s32 %s9, 1
    $region12: #{a_call__.3} parent=5 // pred_fallthru
      _
    %p144 = scmp.lt.s32.totalorder %s9, 2
    // Predicated region
    $region13: #{a_call__.3} parent=5 // pred_check
      %p145 = pneg %p144
    $region14: #{a_call__.3} parent=5 // pred_check_branch
      %147 = sbr.rel (%p145) target = $region16
    $region15: #{a_call__.3} parent=5 // pred_region
      // Predicated region
      $region17: #{a_call__.3} parent=15 // pred_check
        %p148 = pneg %p41
      $region18: #{a_call__.3} parent=15 // pred_check_branch
        %150 = sbr.rel (%p148) target = $region20
      $region19: #{a_call__.3} parent=15 // pred_region
        %p151 = scmp.lt.s32.totalorder %s16, 1
        %s152 = scalar_select %p151, %s16, 1
        %s153 = smul.addr %s152, 4
        %s154 = scalar_lea.vmem %s0, %s153
      $region20: #{a_call__.3} parent=15 // pred_fallthru
        _
      // Predicated region
      $region21: #{a_call__.3} parent=15 // pred_check
        %p155 = pneg %p67
      $region22: #{a_call__.3} parent=15 // pred_check_branch
        %157 = sbr.rel (%p155) target = $region24
      $region23: #{a_call__.3} parent=15 // pred_region
        %p158 = scmp.lt.s32.totalorder %s16, 1
        %s159 = scalar_select %p158, %s16, 1
        %s160 = smul.addr %s159, 8
        %s161 = scalar_lea.vmem %s1, %s160
      $region24: #{a_call__.3} parent=15 // pred_fallthru
        _
      // Predicated region
      $region25: #{a_call__.3} parent=15 // pred_check
        %p162 = pneg %p95
      $region26: #{a_call__.3} parent=15 // pred_check_branch
        %164 = sbr.rel (%p162) target = $region28
      $region27: #{a_call__.3} parent=15 // pred_region
        %p165 = scmp.lt.s32.totalorder %s16, 1
        %s166 = scalar_select %p165, %s16, 1
        %p167 = scmp.lt.s32.totalorder %s17, 0
        %s168 = scalar_select %p167, %s17, 0
        %s169 = smul.addr %s166, 12
        %s170 = sadd.s32 %s168, %s169
        %s171 = smul.addr %s170, 4
        %s172 = scalar_lea.vmem %s2, %s171
      $region28: #{a_call__.3} parent=15 // pred_fallthru
        _
    $region16: #{a_call__.3} parent=5 // pred_fallthru
      _
    %p173 = scmp.le.s32.totalorder 1, %s9
    %p174 = scmp.lt.s32.totalorder %s9, 3
    %p175 = pnand %p173, %p174
    %p176 = pneg %p175
    // Predicated region
    $region29: #{a_call__.3} parent=5 // pred_check
      _
    $region30: #{a_call__.3} parent=5 // pred_check_branch
      %178 = sbr.rel (%p175) target = $region32
    $region31: #{a_call__.3} parent=5 // pred_region
      %s179 = ssub.s32 %s9, 1
      %p180 = scmp.lt.s32.totalorder %s18, 1
      %s181 = scalar_select %p180, %s18, 1
      %s182 = smul.addr %s181, 4
      %s183 = scalar_lea.vmem %s0, %s182
      %p184 = pneg %p47
      %p185 = pneg %p44
      %p186 = scmp.lt.s32.totalorder %s18, 1
      %s187 = scalar_select %p186, %s18, 1
      %s188 = smul.addr %s187, 8
      %s189 = scalar_lea.vmem %s1, %s188
      %p190 = pneg %p73
      %p191 = pneg %p70
      %p192 = scmp.lt.s32.totalorder %s18, 1
      %s193 = scalar_select %p192, %s18, 1
      %p194 = scmp.lt.s32.totalorder %s19, 0
      %s195 = scalar_select %p194, %s19, 0
      %s196 = smul.addr %s193, 12
      %s197 = sadd.s32 %s195, %s196
      %s198 = smul.addr %s197, 4
      %s199 = scalar_lea.vmem %s2, %s198
      %p200 = pneg %p101
      %p201 = pneg %p98
      %p202 = pneg %p129
      %p203 = pneg %p126
      %p204 = scmp.lt.s32.totalorder %s18, 1
      %s205 = scalar_select %p204, %s18, 1
      %p206 = scmp.lt.s32.totalorder %s19, 0
      %s207 = scalar_select %p206, %s19, 0
      %s208 = sadd.s32 %s207, %s205
      %s209 = smul.addr %s208, 8
      %s210 = scalar_lea.vmem %s3, %s209
      %p211 = scmp.lt.s32.totalorder %s18, 1
      %s212 = scalar_select %p211, %s18, 1
      %s213 = smul.addr %s212, 4
      %s214 = scalar_lea.vmem %s0, %s213
      %p215 = scmp.lt.s32.totalorder %s18, 1
      %s216 = scalar_select %p215, %s18, 1
      %s217 = smul.addr %s216, 8
      %s218 = scalar_lea.vmem %s1, %s217
      %p219 = scmp.lt.s32.totalorder %s18, 1
      %s220 = scalar_select %p219, %s18, 1
      %p221 = scmp.lt.s32.totalorder %s19, 0
      %s222 = scalar_select %p221, %s19, 0
      %s223 = smul.addr %s220, 12
      %s224 = sadd.s32 %s222, %s223
      %s225 = smul.addr %s224, 4
      %s226 = scalar_lea.vmem %s2, %s225
      %p227 = scmp.lt.s32.totalorder %s18, 1
      %s228 = scalar_select %p227, %s18, 1
      %p229 = scmp.lt.s32.totalorder %s19, 0
      %s230 = scalar_select %p229, %s19, 0
      %s231 = sadd.s32 %s230, %s228
      %s232 = smul.addr %s231, 8
      %s233 = scalar_lea.vmem %s3, %s232
      %v235 = vld [vmem:[%s214] sm:$0xf]
      %v236 = vld [vmem:[%s226] sm:$0xf]
      %v237 = vld [vmem:[%s226 + $0x4] sm:$0xf]
      %v238 = vld [vmem:[%s226 + $0x8] sm:$0xf]
      %v239 = vld [vmem:[%s226 + $0xc] sm:$0xf]
      %v240 = vld [vmem:[%s226 + $0x10] sm:$0xf]
      %v241 = vld [vmem:[%s226 + $0x14] sm:$0xf]
      %v248 = vunpack.c.l.b16 %v236
      %v249 = vunpack.c.l.b16 %v237
      %v250 = vunpack.c.l.b16 %v238
      %v251 = vunpack.c.l.b16 %v239
      %v252 = vunpack.c.l.b16 %v240
      %v253 = vunpack.c.l.b16 %v241
      %v254 = vpack.c.b16 %v249, %v248
      %v255 = vpack.c.b16 %v251, %v250
      %v256 = vpack.c.b16 %v253, %v252
      %vm260 = vcmask 392192
      %v262 = vsel %vm260, %v235, 0
      %264 = vmatprep.subr.bf16.mxu0 0
      %265 = vmatpush1.bf16.msra.mxu0 %v254
      %266 = vmatprep.subr.bf16.mxu0 0
      %267 = vmatpush1.bf16.msra.mxu0 %v255
      %268 = vmatprep.subr.bf16.mxu0 0
      %269 = vmatpush1.bf16.msra.mxu0 %v256
      %270 = vmatprep.subr.bf16.mxu0 0
      %271 = vmatpush1.bf16.msra.mxu0 0
      %272 = vmatprep.subr.bf16.mxu0 0
      %273 = vmatpush1.bf16.msra.mxu0 0
      %274 = vmatprep.subr.bf16.mxu0 0
      %275 = vmatpush1.bf16.msra.mxu0 0
      %276 = vmatprep.subr.bf16.mxu0 0
      %277 = vmatpush1.bf16.msra.mxu0 0
      %278 = vmatprep.subr.bf16.mxu0 0
      %279 = vmatpush1.bf16.msra.mxu0 0
      %280 = vmatprep.subr.bf16.mxu0 0
      %281 = vmatpush1.bf16.msra.mxu0 0
      %282 = vmatprep.subr.bf16.mxu0 0
      %283 = vmatpush1.bf16.msra.mxu0 0
      %284 = vmatprep.subr.bf16.mxu0 0
      %285 = vmatpush1.bf16.msra.mxu0 0
      %286 = vmatprep.subr.bf16.mxu0 0
      %287 = vmatpush1.bf16.msra.mxu0 0
      %288 = vmatprep.subr.bf16.mxu0 0
      %289 = vmatpush1.bf16.msra.mxu0 0
      %290 = vmatprep.subr.bf16.mxu0 0
      %291 = vmatpush1.bf16.msra.mxu0 0
      %292 = vmatprep.subr.bf16.mxu0 0
      %293 = vmatpush1.bf16.msra.mxu0 0
      %294 = vmatprep.subr.bf16.mxu0 0
      %295 = vmatpush1.bf16.msra.mxu0 0
      %296 = vmatprep.mubr.bf16.mxu0 0
      %297 = vmatmul.mubr.bf16.gmra.mrb[0].mxu0 %v262
      %v298 = vpop.f32.mrb[0].mxu0
      %v299 = vadd.f32 0.0, %v298
      %v300 = vpop.f32.mrb[0].mxu0
      %v301 = vpop.f32.mrb[0].mxu0
      %v302 = vpop.f32.mrb[0].mxu0
      %303 = vdwg.mxu0
      %s304 = scalar_lea.vmem %s226, 24
      %v305 = vld [vmem:[%s304] sm:$0xf]
      %v306 = vld [vmem:[%s304 + $0x4] sm:$0xf]
      %v307 = vld [vmem:[%s304 + $0x8] sm:$0xf]
      %v308 = vld [vmem:[%s304 + $0xc] sm:$0xf]
      %v309 = vld [vmem:[%s304 + $0x10] sm:$0xf]
      %v310 = vld [vmem:[%s304 + $0x14] sm:$0xf]
      %v317 = vunpack.c.l.b16 %v305
      %v318 = vunpack.c.l.b16 %v306
      %v319 = vunpack.c.l.b16 %v307
      %v320 = vunpack.c.l.b16 %v308
      %v321 = vunpack.c.l.b16 %v309
      %v322 = vunpack.c.l.b16 %v310
      %v323 = vpack.c.b16 %v318, %v317
      %v324 = vpack.c.b16 %v320, %v319
      %v325 = vpack.c.b16 %v322, %v321
      %329 = vmatprep.subr.bf16.mxu0 0
      %330 = vmatpush1.bf16.msra.mxu0 %v323
      %331 = vmatprep.subr.bf16.mxu0 0
      %332 = vmatpush1.bf16.msra.mxu0 %v324
      %333 = vmatprep.subr.bf16.mxu0 0
      %334 = vmatpush1.bf16.msra.mxu0 %v325
      %335 = vmatprep.subr.bf16.mxu0 0
      %336 = vmatpush1.bf16.msra.mxu0 0
      %337 = vmatprep.subr.bf16.mxu0 0
      %338 = vmatpush1.bf16.msra.mxu0 0
      %339 = vmatprep.subr.bf16.mxu0 0
      %340 = vmatpush1.bf16.msra.mxu0 0
      %341 = vmatprep.subr.bf16.mxu0 0
      %342 = vmatpush1.bf16.msra.mxu0 0
      %343 = vmatprep.subr.bf16.mxu0 0
      %344 = vmatpush1.bf16.msra.mxu0 0
      %345 = vmatprep.subr.bf16.mxu0 0
      %346 = vmatpush1.bf16.msra.mxu0 0
      %347 = vmatprep.subr.bf16.mxu0 0
      %348 = vmatpush1.bf16.msra.mxu0 0
      %349 = vmatprep.subr.bf16.mxu0 0
      %350 = vmatpush1.bf16.msra.mxu0 0
      %351 = vmatprep.subr.bf16.mxu0 0
      %352 = vmatpush1.bf16.msra.mxu0 0
      %353 = vmatprep.subr.bf16.mxu0 0
      %354 = vmatpush1.bf16.msra.mxu0 0
      %355 = vmatprep.subr.bf16.mxu0 0
      %356 = vmatpush1.bf16.msra.mxu0 0
      %357 = vmatprep.subr.bf16.mxu0 0
      %358 = vmatpush1.bf16.msra.mxu0 0
      %359 = vmatprep.subr.bf16.mxu0 0
      %360 = vmatpush1.bf16.msra.mxu0 0
      %361 = vmatprep.mubr.bf16.mxu0 0
      %362 = vmatmul.mubr.bf16.gmra.mrb[0].mxu0 %v262
      %v363 = vpop.f32.mrb[0].mxu0
      %v364 = vadd.f32 0.0, %v363
      %v365 = vpop.f32.mrb[0].mxu0
      %v366 = vpop.f32.mrb[0].mxu0
      %v367 = vpop.f32.mrb[0].mxu0
      %368 = vdwg.mxu0
      %v369 = vmax.f32 %v299, %v364
      %v370 = vld [vmem:[%s218] sm:$0xff]
      %372 = vset.pattern.permute.xlu0 0
      %373 = vperm.xlu0 %372, %v370
      %v374 = vpop.permute.xlu0 %373
      %v376 = vadd.f32 %v369, %v374
      %377 = vst [vmem:[%s233] sm:$0xff] %v376
      %p378 = scmp.lt.s32.totalorder %s18, 1
      %s379 = scalar_select %p378, %s18, 1
      %p380 = scmp.lt.s32.totalorder %s19, 0
      %s381 = scalar_select %p380, %s19, 0
      %s382 = sadd.s32 %s381, %s379
      %s383 = smul.addr %s382, 8
      %s384 = scalar_lea.vmem %s3, %s383
      // Predicated region
      $region33: #{a_call__.3} parent=31 // pred_check
        %p385 = pneg %p126
      $region34: #{a_call__.3} parent=31 // pred_check_branch
        %387 = sbr.rel (%p385) target = $region36
      $region35: #{a_call__.3} parent=31 // pred_region
        _
      $region36: #{a_call__.3} parent=31 // pred_fallthru
        _
    $region32: #{a_call__.3} parent=5 // pred_fallthru
      _
    %p388 = scmp.le.s32.totalorder 2, %s9
    // Predicated region
    $region37: #{a_call__.3} parent=5 // pred_check
      %p389 = pneg %p388
    $region38: #{a_call__.3} parent=5 // pred_check_branch
      %391 = sbr.rel (%p389) target = $region40
    $region39: #{a_call__.3} parent=5 // pred_region
      %s392 = ssub.s32 %s9, 2
      // Predicated region
      $region41: #{a_call__.3} parent=39 // pred_check
        %p393 = pneg %p132
      $region42: #{a_call__.3} parent=39 // pred_check_branch
        %395 = sbr.rel (%p393) target = $region44
      $region43: #{a_call__.3} parent=39 // pred_region
        %p396 = scmp.lt.s32.totalorder %s20, 1
        %s397 = scalar_select %p396, %s20, 1
        %p398 = scmp.lt.s32.totalorder %s21, 0
        %s399 = scalar_select %p398, %s21, 0
        %s400 = sadd.s32 %s399, %s397
        %s401 = smul.addr %s400, 8
        %s402 = scalar_lea.vmem %s3, %s401
      $region44: #{a_call__.3} parent=39 // pred_fallthru
        _
    $region40: #{a_call__.3} parent=5 // pred_fallthru
      _
  $region6: #{a_call__.3} parent=0 // loop_footer
    %s13 = sadd.s32 1, %s9
  $region7: #{a_call__.3} parent=0 // loop_footer_branch
    %8 = sbr.rel target = $region3
  $region8: #{a_call__.3} parent=0 // loop_exit
    _

</llo_original>
